<compile_context>
chip_gen: v7x
topology: tpu7x:2x2x1
jax: 0.10.0
libtpu: 0.0.40
codegen_flags: <defaults>
</compile_context>

<pallas_src>
import jax
import jax.numpy as jnp
from jax import lax
from jax.experimental import pallas as pl
from jax.experimental.pallas import tpu as pltpu
import numpy as np

KSIZE = 4
STRIDE = 2
PAD = 1
EPS = 1e-5


def up_kernel(xp_ref, w_ref, o_ref):
    # xp_ref: (1, H+2, W+2, Cin)   bf16, spatially zero-padded input
    # w_ref : (4, 4*Cin, Cout)     bf16, per-phase tap-fused weights
    # o_ref : (1, H, W, 4*Cout)    f32, phase-channel layout:
    #         o[0, m, n, (2*dy+dx)*Cout + c] == y[2*m+dy, 2*n+dx, c]
    H, W = o_ref.shape[1], o_ref.shape[2]
    Cin = xp_ref.shape[3]
    Cout = w_ref.shape[2]
    HW = H * W

    xp = xp_ref[0]                                    # (H+2, W+2, Cin)

    ch_sum = jnp.zeros((1, Cout), jnp.float32)
    ch_sq = jnp.zeros((1, Cout), jnp.float32)

    # 4 output phases; each is a 2x2-tap correlation on the un-dilated input,
    # expressed as a single MXU matmul with the taps folded into K.
    for phase, (dy, dx) in enumerate(((0, 0), (0, 1), (1, 0), (1, 1))):
        patches = [
            xp[dy + j:dy + j + H, dx + i:dx + i + W, :].reshape(HW, Cin)
            for j in (0, 1) for i in (0, 1)
        ]
        lhs = jnp.concatenate(patches, axis=-1)       # (HW, 4*Cin) bf16
        y = jnp.dot(lhs, w_ref[phase],
                    preferred_element_type=jnp.float32)   # (HW, Cout) f32

        # One-pass InstanceNorm statistics.
        ch_sum += jnp.sum(y, axis=0, keepdims=True)
        ch_sq += jnp.sum(y * y, axis=0, keepdims=True)

        # Stage raw conv result directly in its output channel block
        # (no concat, no extra VMEM plane); normalized in place below.
        o_ref[0, :, :, phase * Cout:(phase + 1) * Cout] = (
            y.reshape(H, W, Cout))

    # InstanceNorm over all Ho*Wo = 4*H*W positions (biased variance).
    inv_n = 1.0 / (4.0 * HW)
    mean = ch_sum * inv_n                             # (1, Cout)
    var = ch_sq * inv_n - mean * mean
    scale = lax.rsqrt(var + EPS)                      # (1, Cout)  (EUP)
    shift = -mean * scale

    # Per-output-channel scale/shift replicated across the 4 phase blocks.
    scale4 = jnp.tile(scale, (1, 4)).reshape(1, 1, 4 * Cout)
    shift4 = jnp.tile(shift, (1, 4)).reshape(1, 1, 4 * Cout)

    yall = o_ref[0]                                   # (H, W, 4*Cout)
    o_ref[0] = jnp.maximum(yall * scale4 + shift4, 0.0)   # normalize + ReLU


def up_forward(x_nchw, skip_nchw, w_pt):
    """x_nchw: (N, Cin, H, W); skip_nchw: (N, Cs, 2H, 2W);
    w_pt: PyTorch ConvTranspose2d weight (Cin, Cout, 4, 4).
    Returns NCHW tensor (N, Cout + Cs, 2H, 2W), float32."""
    N, Cin, H, W = x_nchw.shape
    Cout = w_pt.shape[1]
    Ho, Wo = STRIDE * H, STRIDE * W

    # NCHW -> NHWC, 1-pixel zero halo (phase decomposition), bf16 operands.
    x = jnp.transpose(x_nchw, (0, 2, 3, 1))
    xp = jnp.pad(x, ((0, 0), (1, 1), (1, 1), (0, 0))).astype(jnp.bfloat16)
    Hp, Wp = H + 2, W + 2

    # Per-phase tap-fused weights: (4, 4*Cin, Cout), phase = 2*dy + dx.
    # Contraction rows ordered (j, i) = (0,0),(0,1),(1,0),(1,1) to match the
    # im2col order used in the kernel; tap index decreases with offset
    # (that is the conv-transpose "flip").
    def phase_w(dy, dx):
        blocks = []
        for j in (0, 1):
            ky = (3 - 2 * j) if dy == 0 else (2 - 2 * j)
            for i in (0, 1):
                kx = (3 - 2 * i) if dx == 0 else (2 - 2 * i)
                blocks.append(w_pt[:, :, ky, kx])     # (Cin, Cout)
        return jnp.concatenate(blocks, axis=0)        # (4*Cin, Cout)

    w_phases = jnp.stack(
        [phase_w(dy, dx) for dy in (0, 1) for dx in (0, 1)], axis=0
    ).astype(jnp.bfloat16)                            # (4, 4*Cin, Cout)

    # VMEM budget: double-buffered input + output blocks + weights + slack.
    vmem_bytes = int(
        2 * Hp * Wp * Cin * 2            # xp block, bf16, 2 buffers
        + 2 * 4 * 4 * Cin * Cout * 2     # weights, bf16, 2 buffers
        + 2 * H * W * 4 * Cout * 4       # output block, f32, 2 buffers
    ) + (4 << 20)
    vmem_limit = max(vmem_bytes, 16 * 1024 * 1024)

    y_phase = pl.pallas_call(
        up_kernel,
        out_shape=jax.ShapeDtypeStruct((N, H, W, 4 * Cout), jnp.float32),
        grid_spec=pltpu.PrefetchScalarGridSpec(
            num_scalar_prefetch=0,
            grid=(N,),
            in_specs=[
                pl.BlockSpec((1, Hp, Wp, Cin), lambda n: (n, 0, 0, 0)),
                pl.BlockSpec((4, 4 * Cin, Cout), lambda n: (0, 0, 0)),
            ],
            out_specs=pl.BlockSpec((1, H, W, 4 * Cout),
                                   lambda n: (n, 0, 0, 0)),
        ),
        compiler_params=pltpu.CompilerParams(
            dimension_semantics=("parallel",),
            vmem_limit_bytes=vmem_limit),
    )(xp, w_phases)

    # Un-interleave phases (layout plumbing in XLA):
    # (N, H, W, dy, dx, C) -> (N, C, H, dy, W, dx) -> (N, C, 2H, 2W)
    y = y_phase.reshape(N, H, W, 2, 2, Cout)
    y = jnp.transpose(y, (0, 5, 1, 3, 2, 4)).reshape(N, Cout, Ho, Wo)

    # skip never enters the kernel: plain XLA concat, already NCHW.
    return jnp.concatenate([y, skip_nchw.astype(jnp.float32)], axis=1)


def up_reference(x_nchw, skip_nchw, w_pt):
    """Pure-JAX f32 reference of the PyTorch Up.forward (NCHW)."""
    pad = KSIZE - 1 - PAD
    w_oihw = jnp.transpose(w_pt[:, :, ::-1, ::-1], (1, 0, 2, 3))
    y = lax.conv_general_dilated(
        x_nchw.astype(jnp.float32), w_oihw.astype(jnp.float32),
        window_strides=(1, 1),
        padding=((pad, pad), (pad, pad)),
        lhs_dilation=(STRIDE, STRIDE),
        dimension_numbers=("NCHW", "OIHW", "NCHW"))
    mean = jnp.mean(y, axis=(2, 3), keepdims=True)
    var = jnp.mean((y - mean) ** 2, axis=(2, 3), keepdims=True)
    y = (y - mean) / jnp.sqrt(var + EPS)
    y = jnp.maximum(y, 0.0)
    return jnp.concatenate([y, skip_nchw.astype(jnp.float32)], axis=1)


if __name__ == "__main__":
    key = jax.random.PRNGKey(0)
    k_x, k_skip, k_w = jax.random.split(key, 3)

    N, Cin, Cout, H, W = 2, 8, 8, 8, 8
    Cs = Cout  # typical U-Net skip has same channel count

    x = jax.random.normal(k_x, (N, Cin, H, W), jnp.float32)
    skip = jax.random.normal(k_skip, (N, Cs, STRIDE * H, STRIDE * W),
                             jnp.float32)
    # "PyTorch-style" ConvTranspose2d weight: (in_ch, out_ch, kH, kW)
    fan = Cin * KSIZE * KSIZE
    w_pt = jax.random.normal(k_w, (Cin, Cout, KSIZE, KSIZE),
                             jnp.float32) / np.sqrt(fan)

    out = up_forward(x, skip, w_pt)
    out = jax.block_until_ready(out)

    ref = up_reference(x, skip, w_pt)
    # Tolerance accounts for bf16 MXU operands (accumulation is f32 and
    # InstanceNorm renormalizes, so error stays at the ~1e-3 level).
    np.testing.assert_allclose(np.asarray(out), np.asarray(ref),
                               atol=2e-2, rtol=2e-2)

    assert out.shape == (N, Cout + Cs, STRIDE * H, STRIDE * W)
    print("KERNEL_OK")
</pallas_src>

<mosaic_0001>
module attributes {stable_mosaic.version = 11 : i64} {
  func.func @up_kernel(%arg0: i32, %arg1: memref<1x10x10x8xbf16, #tpu.memory_space<vmem>>, %arg2: memref<4x32x8xbf16, #tpu.memory_space<vmem>>, %arg3: memref<1x8x8x32xf32, #tpu.memory_space<vmem>>) attributes {dimension_semantics = [#tpu.dimension_semantics<parallel>], iteration_bounds = array<i64: 2>, scalar_prefetch = 0 : i64, scratch_operands = 0 : i64, tpu.core_type = #tpu.core_type<tc>, window_params = [{transform_indices = @transform_0, window_bounds = array<i64: 1, 10, 10, 8>}, {pipeline_mode = #tpu.pipeline_mode<synchronous>, transform_indices = @transform_1, window_bounds = array<i64: 4, 32, 8>}, {transform_indices = @transform_2, window_bounds = array<i64: 1, 8, 8, 32>}]} {
    %c0 = arith.constant 0 : index
    %c0_0 = arith.constant 0 : index
    %c0_1 = arith.constant 0 : index
    %c0_2 = arith.constant 0 : index
    %0 = vector.load %arg1[%c0, %c0_0, %c0_1, %c0_2] : memref<1x10x10x8xbf16, #tpu.memory_space<vmem>>, vector<1x10x10x8xbf16>
    %1 = vector.shape_cast %0 : vector<1x10x10x8xbf16> to vector<10x10x8xbf16>
    %cst = arith.constant 0.000000e+00 : f32
    %2 = vector.broadcast %cst : f32 to vector<1x8xf32>
    %cst_3 = arith.constant 0.000000e+00 : f32
    %3 = vector.broadcast %cst_3 : f32 to vector<1x8xf32>
    %4 = vector.extract_strided_slice %1 {offsets = [0, 0, 0], sizes = [8, 8, 8], strides = [1, 1, 1]} : vector<10x10x8xbf16> to vector<8x8x8xbf16>
    %5 = vector.shape_cast %4 : vector<8x8x8xbf16> to vector<64x8xbf16>
    %6 = vector.extract_strided_slice %1 {offsets = [0, 1, 0], sizes = [8, 8, 8], strides = [1, 1, 1]} : vector<10x10x8xbf16> to vector<8x8x8xbf16>
    %7 = vector.shape_cast %6 : vector<8x8x8xbf16> to vector<64x8xbf16>
    %8 = vector.extract_strided_slice %1 {offsets = [1, 0, 0], sizes = [8, 8, 8], strides = [1, 1, 1]} : vector<10x10x8xbf16> to vector<8x8x8xbf16>
    %9 = vector.shape_cast %8 : vector<8x8x8xbf16> to vector<64x8xbf16>
    %10 = vector.extract_strided_slice %1 {offsets = [1, 1, 0], sizes = [8, 8, 8], strides = [1, 1, 1]} : vector<10x10x8xbf16> to vector<8x8x8xbf16>
    %11 = vector.shape_cast %10 : vector<8x8x8xbf16> to vector<64x8xbf16>
    %12 = tpu.concatenate %5, %7, %9, %11 in 1 : vector<64x8xbf16>, vector<64x8xbf16>, vector<64x8xbf16>, vector<64x8xbf16> -> vector<64x32xbf16>
    %c0_4 = arith.constant 0 : index
    %c0_5 = arith.constant 0 : index
    %c0_6 = arith.constant 0 : index
    %13 = vector.load %arg2[%c0_4, %c0_5, %c0_6] : memref<4x32x8xbf16, #tpu.memory_space<vmem>>, vector<1x32x8xbf16>
    %14 = vector.shape_cast %13 : vector<1x32x8xbf16> to vector<32x8xbf16>
    %cst_7 = arith.constant dense<0.000000e+00> : vector<64x8xf32>
    %15 = tpu.matmul %12, %14, %cst_7 {dimension_numbers = #tpu.dot_dimension_numbers<[1], [0], [0], [1], [0, 0, 1, 1], [], []>} : vector<64x32xbf16>, vector<32x8xbf16>, vector<64x8xf32> -> vector<64x8xf32>
    %cst_8 = arith.constant dense<0.000000e+00> : vector<8xf32>
    %16 = vector.multi_reduction <add>, %15, %cst_8 [0] : vector<64x8xf32> to vector<8xf32>
    %17 = vector.shape_cast %16 : vector<8xf32> to vector<1x8xf32>
    %18 = arith.addf %2, %17 : vector<1x8xf32>
    %19 = arith.mulf %15, %15 : vector<64x8xf32>
    %cst_9 = arith.constant dense<0.000000e+00> : vector<8xf32>
    %20 = vector.multi_reduction <add>, %19, %cst_9 [0] : vector<64x8xf32> to vector<8xf32>
    %21 = vector.shape_cast %20 : vector<8xf32> to vector<1x8xf32>
    %22 = arith.addf %3, %21 : vector<1x8xf32>
    %23 = vector.shape_cast %15 : vector<64x8xf32> to vector<8x8x8xf32>
    %c0_10 = arith.constant 0 : index
    %c0_11 = arith.constant 0 : index
    %c0_12 = arith.constant 0 : index
    %c0_13 = arith.constant 0 : index
    %24 = vector.load %arg3[%c0_10, %c0_11, %c0_12, %c0_13] : memref<1x8x8x32xf32, #tpu.memory_space<vmem>>, vector<1x8x8x8xf32>
    %25 = vector.shape_cast %24 : vector<1x8x8x8xf32> to vector<8x8x8xf32>
    %26 = vector.shape_cast %23 : vector<8x8x8xf32> to vector<1x8x8x8xf32>
    tpu.vector_store %arg3[%c0_10, %c0_11, %c0_12, %c0_13], %26 {strides = array<i32>} : memref<1x8x8x32xf32, #tpu.memory_space<vmem>>, vector<1x8x8x8xf32>,
    %27 = vector.extract_strided_slice %1 {offsets = [0, 1, 0], sizes = [8, 8, 8], strides = [1, 1, 1]} : vector<10x10x8xbf16> to vector<8x8x8xbf16>
    %28 = vector.shape_cast %27 : vector<8x8x8xbf16> to vector<64x8xbf16>
    %29 = vector.extract_strided_slice %1 {offsets = [0, 2, 0], sizes = [8, 8, 8], strides = [1, 1, 1]} : vector<10x10x8xbf16> to vector<8x8x8xbf16>
    %30 = vector.shape_cast %29 : vector<8x8x8xbf16> to vector<64x8xbf16>
    %31 = vector.extract_strided_slice %1 {offsets = [1, 1, 0], sizes = [8, 8, 8], strides = [1, 1, 1]} : vector<10x10x8xbf16> to vector<8x8x8xbf16>
    %32 = vector.shape_cast %31 : vector<8x8x8xbf16> to vector<64x8xbf16>
    %33 = vector.extract_strided_slice %1 {offsets = [1, 2, 0], sizes = [8, 8, 8], strides = [1, 1, 1]} : vector<10x10x8xbf16> to vector<8x8x8xbf16>
    %34 = vector.shape_cast %33 : vector<8x8x8xbf16> to vector<64x8xbf16>
    %35 = tpu.concatenate %28, %30, %32, %34 in 1 : vector<64x8xbf16>, vector<64x8xbf16>, vector<64x8xbf16>, vector<64x8xbf16> -> vector<64x32xbf16>
    %c1 = arith.constant 1 : index
    %c0_14 = arith.constant 0 : index
    %c0_15 = arith.constant 0 : index
    %36 = vector.load %arg2[%c1, %c0_14, %c0_15] : memref<4x32x8xbf16, #tpu.memory_space<vmem>>, vector<1x32x8xbf16>
    %37 = vector.shape_cast %36 : vector<1x32x8xbf16> to vector<32x8xbf16>
    %cst_16 = arith.constant dense<0.000000e+00> : vector<64x8xf32>
    %38 = tpu.matmul %35, %37, %cst_16 {dimension_numbers = #tpu.dot_dimension_numbers<[1], [0], [0], [1], [0, 0, 1, 1], [], []>} : vector<64x32xbf16>, vector<32x8xbf16>, vector<64x8xf32> -> vector<64x8xf32>
    %cst_17 = arith.constant dense<0.000000e+00> : vector<8xf32>
    %39 = vector.multi_reduction <add>, %38, %cst_17 [0] : vector<64x8xf32> to vector<8xf32>
    %40 = vector.shape_cast %39 : vector<8xf32> to vector<1x8xf32>
    %41 = arith.addf %18, %40 : vector<1x8xf32>
    %42 = arith.mulf %38, %38 : vector<64x8xf32>
    %cst_18 = arith.constant dense<0.000000e+00> : vector<8xf32>
    %43 = vector.multi_reduction <add>, %42, %cst_18 [0] : vector<64x8xf32> to vector<8xf32>
    %44 = vector.shape_cast %43 : vector<8xf32> to vector<1x8xf32>
    %45 = arith.addf %22, %44 : vector<1x8xf32>
    %46 = vector.shape_cast %38 : vector<64x8xf32> to vector<8x8x8xf32>
    %c0_19 = arith.constant 0 : index
    %c0_20 = arith.constant 0 : index
    %c0_21 = arith.constant 0 : index
    %c8 = arith.constant 8 : index
    %47 = vector.load %arg3[%c0_19, %c0_20, %c0_21, %c8] : memref<1x8x8x32xf32, #tpu.memory_space<vmem>>, vector<1x8x8x8xf32>
    %48 = vector.shape_cast %47 : vector<1x8x8x8xf32> to vector<8x8x8xf32>
    %49 = vector.shape_cast %46 : vector<8x8x8xf32> to vector<1x8x8x8xf32>
    tpu.vector_store %arg3[%c0_19, %c0_20, %c0_21, %c8], %49 {strides = array<i32>} : memref<1x8x8x32xf32, #tpu.memory_space<vmem>>, vector<1x8x8x8xf32>,
    %50 = vector.extract_strided_slice %1 {offsets = [1, 0, 0], sizes = [8, 8, 8], strides = [1, 1, 1]} : vector<10x10x8xbf16> to vector<8x8x8xbf16>
    %51 = vector.shape_cast %50 : vector<8x8x8xbf16> to vector<64x8xbf16>
    %52 = vector.extract_strided_slice %1 {offsets = [1, 1, 0], sizes = [8, 8, 8], strides = [1, 1, 1]} : vector<10x10x8xbf16> to vector<8x8x8xbf16>
    %53 = vector.shape_cast %52 : vector<8x8x8xbf16> to vector<64x8xbf16>
    %54 = vector.extract_strided_slice %1 {offsets = [2, 0, 0], sizes = [8, 8, 8], strides = [1, 1, 1]} : vector<10x10x8xbf16> to vector<8x8x8xbf16>
    %55 = vector.shape_cast %54 : vector<8x8x8xbf16> to vector<64x8xbf16>
    %56 = vector.extract_strided_slice %1 {offsets = [2, 1, 0], sizes = [8, 8, 8], strides = [1, 1, 1]} : vector<10x10x8xbf16> to vector<8x8x8xbf16>
    %57 = vector.shape_cast %56 : vector<8x8x8xbf16> to vector<64x8xbf16>
    %58 = tpu.concatenate %51, %53, %55, %57 in 1 : vector<64x8xbf16>, vector<64x8xbf16>, vector<64x8xbf16>, vector<64x8xbf16> -> vector<64x32xbf16>
    %c2 = arith.constant 2 : index
    %c0_22 = arith.constant 0 : index
    %c0_23 = arith.constant 0 : index
    %59 = vector.load %arg2[%c2, %c0_22, %c0_23] : memref<4x32x8xbf16, #tpu.memory_space<vmem>>, vector<1x32x8xbf16>
    %60 = vector.shape_cast %59 : vector<1x32x8xbf16> to vector<32x8xbf16>
    %cst_24 = arith.constant dense<0.000000e+00> : vector<64x8xf32>
    %61 = tpu.matmul %58, %60, %cst_24 {dimension_numbers = #tpu.dot_dimension_numbers<[1], [0], [0], [1], [0, 0, 1, 1], [], []>} : vector<64x32xbf16>, vector<32x8xbf16>, vector<64x8xf32> -> vector<64x8xf32>
    %cst_25 = arith.constant dense<0.000000e+00> : vector<8xf32>
    %62 = vector.multi_reduction <add>, %61, %cst_25 [0] : vector<64x8xf32> to vector<8xf32>
    %63 = vector.shape_cast %62 : vector<8xf32> to vector<1x8xf32>
    %64 = arith.addf %41, %63 : vector<1x8xf32>
    %65 = arith.mulf %61, %61 : vector<64x8xf32>
    %cst_26 = arith.constant dense<0.000000e+00> : vector<8xf32>
    %66 = vector.multi_reduction <add>, %65, %cst_26 [0] : vector<64x8xf32> to vector<8xf32>
    %67 = vector.shape_cast %66 : vector<8xf32> to vector<1x8xf32>
    %68 = arith.addf %45, %67 : vector<1x8xf32>
    %69 = vector.shape_cast %61 : vector<64x8xf32> to vector<8x8x8xf32>
    %c0_27 = arith.constant 0 : index
    %c0_28 = arith.constant 0 : index
    %c0_29 = arith.constant 0 : index
    %c16 = arith.constant 16 : index
    %70 = vector.load %arg3[%c0_27, %c0_28, %c0_29, %c16] : memref<1x8x8x32xf32, #tpu.memory_space<vmem>>, vector<1x8x8x8xf32>
    %71 = vector.shape_cast %70 : vector<1x8x8x8xf32> to vector<8x8x8xf32>
    %72 = vector.shape_cast %69 : vector<8x8x8xf32> to vector<1x8x8x8xf32>
    tpu.vector_store %arg3[%c0_27, %c0_28, %c0_29, %c16], %72 {strides = array<i32>} : memref<1x8x8x32xf32, #tpu.memory_space<vmem>>, vector<1x8x8x8xf32>,
    %73 = vector.extract_strided_slice %1 {offsets = [1, 1, 0], sizes = [8, 8, 8], strides = [1, 1, 1]} : vector<10x10x8xbf16> to vector<8x8x8xbf16>
    %74 = vector.shape_cast %73 : vector<8x8x8xbf16> to vector<64x8xbf16>
    %75 = vector.extract_strided_slice %1 {offsets = [1, 2, 0], sizes = [8, 8, 8], strides = [1, 1, 1]} : vector<10x10x8xbf16> to vector<8x8x8xbf16>
    %76 = vector.shape_cast %75 : vector<8x8x8xbf16> to vector<64x8xbf16>
    %77 = vector.extract_strided_slice %1 {offsets = [2, 1, 0], sizes = [8, 8, 8], strides = [1, 1, 1]} : vector<10x10x8xbf16> to vector<8x8x8xbf16>
    %78 = vector.shape_cast %77 : vector<8x8x8xbf16> to vector<64x8xbf16>
    %79 = vector.extract_strided_slice %1 {offsets = [2, 2, 0], sizes = [8, 8, 8], strides = [1, 1, 1]} : vector<10x10x8xbf16> to vector<8x8x8xbf16>
    %80 = vector.shape_cast %79 : vector<8x8x8xbf16> to vector<64x8xbf16>
    %81 = tpu.concatenate %74, %76, %78, %80 in 1 : vector<64x8xbf16>, vector<64x8xbf16>, vector<64x8xbf16>, vector<64x8xbf16> -> vector<64x32xbf16>
    %c3 = arith.constant 3 : index
    %c0_30 = arith.constant 0 : index
    %c0_31 = arith.constant 0 : index
    %82 = vector.load %arg2[%c3, %c0_30, %c0_31] : memref<4x32x8xbf16, #tpu.memory_space<vmem>>, vector<1x32x8xbf16>
    %83 = vector.shape_cast %82 : vector<1x32x8xbf16> to vector<32x8xbf16>
    %cst_32 = arith.constant dense<0.000000e+00> : vector<64x8xf32>
    %84 = tpu.matmul %81, %83, %cst_32 {dimension_numbers = #tpu.dot_dimension_numbers<[1], [0], [0], [1], [0, 0, 1, 1], [], []>} : vector<64x32xbf16>, vector<32x8xbf16>, vector<64x8xf32> -> vector<64x8xf32>
    %cst_33 = arith.constant dense<0.000000e+00> : vector<8xf32>
    %85 = vector.multi_reduction <add>, %84, %cst_33 [0] : vector<64x8xf32> to vector<8xf32>
    %86 = vector.shape_cast %85 : vector<8xf32> to vector<1x8xf32>
    %87 = arith.addf %64, %86 : vector<1x8xf32>
    %88 = arith.mulf %84, %84 : vector<64x8xf32>
    %cst_34 = arith.constant dense<0.000000e+00> : vector<8xf32>
    %89 = vector.multi_reduction <add>, %88, %cst_34 [0] : vector<64x8xf32> to vector<8xf32>
    %90 = vector.shape_cast %89 : vector<8xf32> to vector<1x8xf32>
    %91 = arith.addf %68, %90 : vector<1x8xf32>
    %92 = vector.shape_cast %84 : vector<64x8xf32> to vector<8x8x8xf32>
    %c0_35 = arith.constant 0 : index
    %c0_36 = arith.constant 0 : index
    %c0_37 = arith.constant 0 : index
    %c24 = arith.constant 24 : index
    %93 = vector.load %arg3[%c0_35, %c0_36, %c0_37, %c24] : memref<1x8x8x32xf32, #tpu.memory_space<vmem>>, vector<1x8x8x8xf32>
    %94 = vector.shape_cast %93 : vector<1x8x8x8xf32> to vector<8x8x8xf32>
    %95 = vector.shape_cast %92 : vector<8x8x8xf32> to vector<1x8x8x8xf32>
    tpu.vector_store %arg3[%c0_35, %c0_36, %c0_37, %c24], %95 {strides = array<i32>} : memref<1x8x8x32xf32, #tpu.memory_space<vmem>>, vector<1x8x8x8xf32>,
    %cst_38 = arith.constant 3.906250e-03 : f32
    %96 = vector.broadcast %cst_38 : f32 to vector<1x8xf32>
    %97 = arith.mulf %87, %96 : vector<1x8xf32>
    %cst_39 = arith.constant 3.906250e-03 : f32
    %98 = vector.broadcast %cst_39 : f32 to vector<1x8xf32>
    %99 = arith.mulf %91, %98 : vector<1x8xf32>
    %100 = arith.mulf %97, %97 : vector<1x8xf32>
    %101 = arith.subf %99, %100 : vector<1x8xf32>
    %cst_40 = arith.constant 9.99999974E-6 : f32
    %102 = vector.broadcast %cst_40 : f32 to vector<1x8xf32>
    %103 = arith.addf %101, %102 : vector<1x8xf32>
    %104 = math.rsqrt %103 : vector<1x8xf32>
    %cst_41 = arith.constant 0.000000e+00 : f32
    %105 = vector.broadcast %cst_41 : f32 to vector<1x8xf32>
    %106 = arith.subf %105, %97 : vector<1x8xf32>
    %107 = arith.mulf %106, %104 : vector<1x8xf32>
    %108 = tpu.concatenate %104, %104, %104, %104 in 1 : vector<1x8xf32>, vector<1x8xf32>, vector<1x8xf32>, vector<1x8xf32> -> vector<1x32xf32>
    %109 = vector.shape_cast %108 : vector<1x32xf32> to vector<1x1x32xf32>
    %110 = tpu.concatenate %107, %107, %107, %107 in 1 : vector<1x8xf32>, vector<1x8xf32>, vector<1x8xf32>, vector<1x8xf32> -> vector<1x32xf32>
    %111 = vector.shape_cast %110 : vector<1x32xf32> to vector<1x1x32xf32>
    %c0_42 = arith.constant 0 : index
    %c0_43 = arith.constant 0 : index
    %c0_44 = arith.constant 0 : index
    %c0_45 = arith.constant 0 : index
    %112 = vector.load %arg3[%c0_42, %c0_43, %c0_44, %c0_45] : memref<1x8x8x32xf32, #tpu.memory_space<vmem>>, vector<1x8x8x32xf32>
    %113 = vector.shape_cast %112 : vector<1x8x8x32xf32> to vector<8x8x32xf32>
    %114 = vector.broadcast %109 : vector<1x1x32xf32> to vector<8x8x32xf32>
    %115 = arith.mulf %113, %114 : vector<8x8x32xf32>
    %116 = vector.broadcast %111 : vector<1x1x32xf32> to vector<8x8x32xf32>
    %117 = arith.addf %115, %116 : vector<8x8x32xf32>
    %cst_46 = arith.constant 0.000000e+00 : f32
    %118 = vector.broadcast %cst_46 : f32 to vector<8x8x32xf32>
    %119 = arith.maximumf %117, %118 : vector<8x8x32xf32>
    %c0_47 = arith.constant 0 : index
    %c0_48 = arith.constant 0 : index
    %c0_49 = arith.constant 0 : index
    %c0_50 = arith.constant 0 : index
    %120 = vector.load %arg3[%c0_47, %c0_48, %c0_49, %c0_50] : memref<1x8x8x32xf32, #tpu.memory_space<vmem>>, vector<1x8x8x32xf32>
    %121 = vector.shape_cast %120 : vector<1x8x8x32xf32> to vector<8x8x32xf32>
    %122 = vector.shape_cast %119 : vector<8x8x32xf32> to vector<1x8x8x32xf32>
    tpu.vector_store %arg3[%c0_47, %c0_48, %c0_49, %c0_50], %122 {strides = array<i32>} : memref<1x8x8x32xf32, #tpu.memory_space<vmem>>, vector<1x8x8x32xf32>,
    return
  }
  func.func @transform_0(%arg0: i32) -> (i32, i32, i32, i32) {
    %c0_i32 = arith.constant 0 : i32
    %c0_i32_0 = arith.constant 0 : i32
    %c0_i32_1 = arith.constant 0 : i32
    %c0_i32_2 = arith.constant 0 : i32
    return %arg0, %c0_i32, %c0_i32_0, %c0_i32_1 : i32, i32, i32, i32
  }
  func.func @transform_1(%arg0: i32) -> (i32, i32, i32) {
    %c0_i32 = arith.constant 0 : i32
    %c0_i32_0 = arith.constant 0 : i32
    %c0_i32_1 = arith.constant 0 : i32
    %c0_i32_2 = arith.constant 0 : i32
    return %c0_i32, %c0_i32_0, %c0_i32_1 : i32, i32, i32
  }
  func.func @transform_2(%arg0: i32) -> (i32, i32, i32, i32) {
    %c0_i32 = arith.constant 0 : i32
    %c0_i32_0 = arith.constant 0 : i32
    %c0_i32_1 = arith.constant 0 : i32
    %c0_i32_2 = arith.constant 0 : i32
    return %arg0, %c0_i32, %c0_i32_0, %c0_i32_1 : i32, i32, i32, i32
  }
}

</mosaic_0001>

<llo_original>
// kernel: tpu_custom_call.1
$region0: #{tpu_custom_call.1}
  #allocation0 [shape = 'u32[]', space=smem, size = 0x4, offset = 0x4, fixed_abs, tag = 'smem constant byte address 0x4 - core index']
  #allocation1 [shape = 'u32[144,128]{1,0:T(1,128)}', space=vmem, size = 0x12000, scoped, tag = 'internal scratch']
  %s0 = inlined_call_operand.vmem [shape: bf16[2,10,10,8], index: 0, kind: input, shape index: {}]
  %s1 = inlined_call_operand.vmem [shape: bf16[4,32,8], index: 1, kind: input, shape index: {}]
  %s2 = inlined_call_operand.hbm [shape: f32[2,8,8,32], index: 2, kind: output, shape index: {}]
  %s3 = sld [smem:[#allocation0]]
  $region41: #{tpu_custom_call.1} parent=0
    _
  %s5 = ssub.s32 1, %s3
  %s6 = scalar_select 0, %s5, %s3
  $region1: #{tpu_custom_call.1} parent=0
    #allocation2 [shape = 'u8[65536]{0}', space=vmem, size = 0x10000, scoped, tag = 'output window, operand 0']
    #allocation3 [shape = 's32[2]{0}', space=sflag, size = 0x8, scoped, tag = 'scoped memory for tpu_custom_call.1']
    %7 = vsyncpa [#allocation3], 0
    %s8 = scalar_lea.sflag [#allocation3], 1
    %9 = vsyncpa %s8, 0
    loop: start=0, step=1, limit=4
    $region2: #{tpu_custom_call.1} parent=1 // loop_pre_header
      _
    $region3: #{tpu_custom_call.1} parent=1 // loop_header
      %s11 = sphi 0, %s15
      %p12 = scmp.ge.s32.totalorder %s11, 4
      %s21 = sphi 0, %s23
      %s24 = sphi 0, %s21
      %s25 = sphi 0, %s24
      %s41 = sphi 0, %s25
      %s45 = sphi 0, %s45
      %s47 = sphi 0, %s45
      %s48 = sphi 0, %s47
      %s62 = sphi 0, %s48
      %s68 = sphi 0, %s70
      %s71 = sphi 0, %s68
      %s72 = sphi 0, %s71
      %s88 = sphi 0, %s72
    $region4: #{tpu_custom_call.1} parent=1 // loop_header_branch
      %14 = sbr.rel (%p12) target = $region8
    $region5: #{tpu_custom_call.1} parent=1 // loop_body
      %s16 = ssub.s32 %s11, 1
      %s17 = ssub.s32 %s11, 2
      %s18 = sadd.s32 %s11, 1
      %s19 = ssub.s32 %s11, %s18
      %p20 = scmp.eq.s32.totalorder %s19, 0
      %s22 = sadd.s32 %s21, 1
      %s23 = scalar_select %p20, %s21, %s22
      %p26 = pneg %p20
      %p27 = scmp.eq.s32.totalorder %s11, 1
      %p28 = por %p26, %p27
      %p29 = scmp.ne.s32.totalorder %s21, %s24
      %p30 = scmp.eq.s32.totalorder %s11, 0
      %p31 = por %p29, %p30
      %p32 = scmp.ne.s32.totalorder %s21, %s24
      %p33 = scmp.eq.s32.totalorder %s16, 1
      %p34 = por %p32, %p33
      %p35 = scmp.ne.s32.totalorder %s24, %s25
      %p36 = scmp.eq.s32.totalorder %s16, 0
      %p37 = por %p35, %p36
      %p38 = scmp.ne.s32.totalorder %s24, %s25
      %p39 = scmp.eq.s32.totalorder %s17, 1
      %p40 = por %p38, %p39
      %p42 = scmp.ne.s32.totalorder %s25, %s41
      %p43 = scmp.eq.s32.totalorder %s17, 0
      %p44 = por %p42, %p43
      %s46 = sadd.s32 %s45, 1
      %p49 = scmp.eq.s32.totalorder %s11, 1
      %p50 = scmp.ne.s32.totalorder %s45, %s47
      %p51 = scmp.eq.s32.totalorder %s11, 0
      %p52 = por %p50, %p51
      %p53 = scmp.ne.s32.totalorder %s45, %s47
      %p54 = scmp.eq.s32.totalorder %s16, 1
      %p55 = por %p53, %p54
      %p56 = scmp.ne.s32.totalorder %s47, %s48
      %p57 = scmp.eq.s32.totalorder %s16, 0
      %p58 = por %p56, %p57
      %p59 = scmp.ne.s32.totalorder %s47, %s48
      %p60 = scmp.eq.s32.totalorder %s17, 1
      %p61 = por %p59, %p60
      %p63 = scmp.ne.s32.totalorder %s48, %s62
      %p64 = scmp.eq.s32.totalorder %s17, 0
      %p65 = por %p63, %p64
      %s66 = ssub.s32 %s11, %s18
      %p67 = scmp.eq.s32.totalorder %s66, 0
      %s69 = sadd.s32 %s68, 1
      %s70 = scalar_select %p67, %s68, %s69
      %p73 = pneg %p67
      %p74 = scmp.eq.s32.totalorder %s11, 1
      %p75 = por %p73, %p74
      %p76 = scmp.ne.s32.totalorder %s68, %s71
      %p77 = scmp.eq.s32.totalorder %s11, 0
      %p78 = por %p76, %p77
      %p79 = scmp.ne.s32.totalorder %s68, %s71
      %p80 = scmp.eq.s32.totalorder %s16, 1
      %p81 = por %p79, %p80
      %p82 = scmp.ne.s32.totalorder %s71, %s72
      %p83 = scmp.eq.s32.totalorder %s16, 0
      %p84 = por %p82, %p83
      %p85 = scmp.ne.s32.totalorder %s71, %s72
      %p86 = scmp.eq.s32.totalorder %s17, 1
      %p87 = por %p85, %p86
      %p89 = scmp.ne.s32.totalorder %s72, %s88
      %p90 = scmp.eq.s32.totalorder %s17, 0
      %p91 = por %p89, %p90
      %p92 = scmp.le.s32.totalorder 1, %s11
      %p93 = scmp.lt.s32.totalorder %s11, 3
      %p94 = pnand %p92, %p93
      %p95 = pneg %p94
      // Predicated region
      $region9: #{tpu_custom_call.1} parent=5 // pred_check
        _
      $region10: #{tpu_custom_call.1} parent=5 // pred_check_branch
        %97 = sbr.rel (%p94) target = $region12
      $region11: #{tpu_custom_call.1} parent=5 // pred_region
        %s98 = ssub.s32 %s11, 1
        // Predicated region
        $region13: #{tpu_custom_call.1} parent=11 // pred_check
          %p99 = pneg %p58
        $region14: #{tpu_custom_call.1} parent=11 // pred_check_branch
          %101 = sbr.rel (%p99) target = $region16
        $region15: #{tpu_custom_call.1} parent=11 // pred_region
          _
        $region16: #{tpu_custom_call.1} parent=11 // pred_fallthru
          _
      $region12: #{tpu_custom_call.1} parent=5 // pred_fallthru
        _
      %p102 = scmp.lt.s32.totalorder %s11, 2
      // Predicated region
      $region17: #{tpu_custom_call.1} parent=5 // pred_check
        %p103 = pneg %p102
      $region18: #{tpu_custom_call.1} parent=5 // pred_check_branch
        %105 = sbr.rel (%p103) target = $region20
      $region19: #{tpu_custom_call.1} parent=5 // pred_region
        // Predicated region
        $region21: #{tpu_custom_call.1} parent=19 // pred_check
          %p106 = pneg %p31
        $region22: #{tpu_custom_call.1} parent=19 // pred_check_branch
          %108 = sbr.rel (%p106) target = $region24
        $region23: #{tpu_custom_call.1} parent=19 // pred_region
          %p109 = scmp.lt.s32.totalorder %s11, 1
          %s110 = scalar_select %p109, %s11, 1
          %s111 = smul.addr %s110, 20
          %s112 = smul.addr %s111, 4
          %s113 = scalar_lea.vmem %s0, %s112
        $region24: #{tpu_custom_call.1} parent=19 // pred_fallthru
          _
      $region20: #{tpu_custom_call.1} parent=5 // pred_fallthru
        _
      %p114 = scmp.le.s32.totalorder 1, %s11
      %p115 = scmp.lt.s32.totalorder %s11, 3
      %p116 = pnand %p114, %p115
      %p117 = pneg %p116
      // Predicated region
      $region25: #{tpu_custom_call.1} parent=5 // pred_check
        _
      $region26: #{tpu_custom_call.1} parent=5 // pred_check_branch
        %119 = sbr.rel (%p116) target = $region28
      $region27: #{tpu_custom_call.1} parent=5 // pred_region
        %s120 = ssub.s32 %s11, 1
        %p121 = scmp.lt.s32.totalorder %s16, 1
        %s122 = scalar_select %p121, %s16, 1
        %s123 = smul.addr %s122, 20
        %s124 = smul.addr %s123, 4
        %s125 = scalar_lea.vmem %s0, %s124
        %p126 = pneg %p37
        %p127 = pneg %p34
        %p128 = pneg %p58
        %p129 = pneg %p55
        %p130 = pneg %p84
        %p131 = pneg %p81
        %s132 = sand.u32 %s71, 1
        %s133 = scalar_lea.sflag [#allocation3], %s132
        %s134 = sand.u32 %s71, 1
        %s135 = smul.addr %s134, 64
        %s136 = scalar_lea.vmem [#allocation2], %s135
        %p137 = scmp.lt.s32.totalorder %s16, 1
        %s138 = scalar_select %p137, %s16, 1
        %s139 = smul.addr %s138, 20
        %s140 = smul.addr %s139, 4
        %s141 = scalar_lea.vmem %s0, %s140
        %v143 = vld [vmem:[%s141] sm:$0xf]
        %v144 = vld [vmem:[%s141 + $0x4] sm:$0x1]
        %v145 = vld [vmem:[%s141 + $0x8] sm:$0xf]
        %v146 = vld [vmem:[%s141 + $0xc] sm:$0x1]
        %v147 = vld [vmem:[%s141 + $0x10] sm:$0xf]
        %v148 = vld [vmem:[%s141 + $0x14] sm:$0x1]
        %v149 = vld [vmem:[%s141 + $0x18] sm:$0xf]
        %v150 = vld [vmem:[%s141 + $0x1c] sm:$0x1]
        %v151 = vld [vmem:[%s141 + $0x20] sm:$0xf]
        %v152 = vld [vmem:[%s141 + $0x24] sm:$0x1]
        %v153 = vld [vmem:[%s141 + $0x28] sm:$0xf]
        %v154 = vld [vmem:[%s141 + $0x2c] sm:$0x1]
        %v155 = vld [vmem:[%s141 + $0x30] sm:$0xf]
        %v156 = vld [vmem:[%s141 + $0x34] sm:$0x1]
        %v157 = vld [vmem:[%s141 + $0x38] sm:$0xf]
        %v158 = vld [vmem:[%s141 + $0x3c] sm:$0x1]
        %v159 = vld [vmem:[%s141 + $0x40] sm:$0xf]
        %v160 = vld [vmem:[%s141 + $0x44] sm:$0x1]
        %v161 = vld [vmem:[%s141 + $0x48] sm:$0xf]
        %v162 = vld [vmem:[%s141 + $0x4c] sm:$0x1]
        %vm163 = vsmask.f32 3328
        %vm164 = vsmask.f32 7440
        %vm165 = vmor %vm163, %vm164
        %v167 = vshrl.u32 %v143, 16
        %v169 = vrot.slane %v167, 4
        %v170 = vshll.u32 %v143, 16
        %v172 = vrot.slane %v170, 5
        %v173 = vor.u32 %v169, %v172
        %v174 = vrot.slane %v173, 4
        %v176 = vshll.u32 %v144, 16
        %v178 = vrot.slane %v176, 5
        %v179 = vsel %vm165, %v174, %v178
        %v181 = vshrl.u32 %v145, 16
        %v183 = vrot.slane %v181, 4
        %v184 = vshll.u32 %v145, 16
        %v186 = vrot.slane %v184, 5
        %v187 = vor.u32 %v183, %v186
        %v188 = vrot.slane %v187, 4
        %v190 = vshll.u32 %v146, 16
        %v192 = vrot.slane %v190, 5
        %v193 = vsel %vm165, %v188, %v192
        %v195 = vshrl.u32 %v147, 16
        %v197 = vrot.slane %v195, 4
        %v198 = vshll.u32 %v147, 16
        %v200 = vrot.slane %v198, 5
        %v201 = vor.u32 %v197, %v200
        %v202 = vrot.slane %v201, 4
        %v204 = vshll.u32 %v148, 16
        %v206 = vrot.slane %v204, 5
        %v207 = vsel %vm165, %v202, %v206
        %v209 = vshrl.u32 %v149, 16
        %v211 = vrot.slane %v209, 4
        %v212 = vshll.u32 %v149, 16
        %v214 = vrot.slane %v212, 5
        %v215 = vor.u32 %v211, %v214
        %v216 = vrot.slane %v215, 4
        %v218 = vshll.u32 %v150, 16
        %v220 = vrot.slane %v218, 5
        %v221 = vsel %vm165, %v216, %v220
        %v223 = vshrl.u32 %v151, 16
        %v225 = vrot.slane %v223, 4
        %v226 = vshll.u32 %v151, 16
        %v228 = vrot.slane %v226, 5
        %v229 = vor.u32 %v225, %v228
        %v230 = vrot.slane %v229, 4
        %v232 = vshll.u32 %v152, 16
        %v234 = vrot.slane %v232, 5
        %v235 = vsel %vm165, %v230, %v234
        %v237 = vshrl.u32 %v153, 16
        %v239 = vrot.slane %v237, 4
        %v240 = vshll.u32 %v153, 16
        %v242 = vrot.slane %v240, 5
        %v243 = vor.u32 %v239, %v242
        %v244 = vrot.slane %v243, 4
        %v246 = vshll.u32 %v154, 16
        %v248 = vrot.slane %v246, 5
        %v249 = vsel %vm165, %v244, %v248
        %v251 = vshrl.u32 %v155, 16
        %v253 = vrot.slane %v251, 4
        %v254 = vshll.u32 %v155, 16
        %v256 = vrot.slane %v254, 5
        %v257 = vor.u32 %v253, %v256
        %v258 = vrot.slane %v257, 4
        %v260 = vshll.u32 %v156, 16
        %v262 = vrot.slane %v260, 5
        %v263 = vsel %vm165, %v258, %v262
        %v265 = vshrl.u32 %v157, 16
        %v267 = vrot.slane %v265, 4
        %v268 = vshll.u32 %v157, 16
        %v270 = vrot.slane %v268, 5
        %v271 = vor.u32 %v267, %v270
        %v272 = vrot.slane %v271, 4
        %v274 = vshll.u32 %v158, 16
        %v276 = vrot.slane %v274, 5
        %v277 = vsel %vm165, %v272, %v276
        %v279 = vshrl.u32 %v159, 16
        %v281 = vrot.slane %v279, 4
        %v282 = vshll.u32 %v159, 16
        %v284 = vrot.slane %v282, 5
        %v285 = vor.u32 %v281, %v284
        %v286 = vrot.slane %v285, 4
        %v288 = vshll.u32 %v160, 16
        %v290 = vrot.slane %v288, 5
        %v291 = vsel %vm165, %v286, %v290
        %v300 = vunpack.c.l.b16 %v143
        %v301 = vunpack.c.l.b16 %v145
        %v302 = vunpack.c.l.b16 %v147
        %v303 = vunpack.c.l.b16 %v149
        %v304 = vunpack.c.l.b16 %v151
        %v305 = vunpack.c.l.b16 %v153
        %v306 = vunpack.c.l.b16 %v155
        %v307 = vunpack.c.l.b16 %v157
        %v308 = vpack.c.b16 %v301, %v300
        %v309 = vpack.c.b16 %v303, %v302
        %v310 = vpack.c.b16 %v305, %v304
        %v311 = vpack.c.b16 %v307, %v306
        %v312 = vunpack.c.l.b16 %v179
        %v313 = vunpack.c.l.b16 %v193
        %v314 = vunpack.c.l.b16 %v207
        %v315 = vunpack.c.l.b16 %v221
        %v316 = vunpack.c.l.b16 %v235
        %v317 = vunpack.c.l.b16 %v249
        %v318 = vunpack.c.l.b16 %v263
        %v319 = vunpack.c.l.b16 %v277
        %v320 = vpack.c.b16 %v313, %v312
        %v321 = vpack.c.b16 %v315, %v314
        %v322 = vpack.c.b16 %v317, %v316
        %v323 = vpack.c.b16 %v319, %v318
        %324 = vrot.lane.b32.xlu0 %v320, 8
        %v325 = vpop.permute.xlu0 %324
        %326 = vrot.lane.b32.xlu0 %v321, 8
        %v327 = vpop.permute.xlu0 %326
        %328 = vrot.lane.b32.xlu0 %v322, 8
        %v329 = vpop.permute.xlu0 %328
        %330 = vrot.lane.b32.xlu0 %v323, 8
        %v331 = vpop.permute.xlu0 %330
        %v333 = vunpack.c.l.b16 %v159
        %v334 = vpack.c.b16 %v302, %v301
        %v335 = vpack.c.b16 %v304, %v303
        %v336 = vpack.c.b16 %v306, %v305
        %v337 = vpack.c.b16 %v333, %v307
        %338 = vrot.lane.b32.xlu0 %v334, 16
        %v339 = vpop.permute.xlu0 %338
        %340 = vrot.lane.b32.xlu0 %v335, 16
        %v341 = vpop.permute.xlu0 %340
        %342 = vrot.lane.b32.xlu0 %v336, 16
        %v343 = vpop.permute.xlu0 %342
        %344 = vrot.lane.b32.xlu0 %v337, 16
        %v345 = vpop.permute.xlu0 %344
        %v346 = vunpack.c.l.b16 %v291
        %v347 = vpack.c.b16 %v314, %v313
        %v348 = vpack.c.b16 %v316, %v315
        %v349 = vpack.c.b16 %v318, %v317
        %v350 = vpack.c.b16 %v346, %v319
        %351 = vrot.lane.b32.xlu0 %v347, 24
        %v352 = vpop.permute.xlu0 %351
        %353 = vrot.lane.b32.xlu0 %v348, 24
        %v354 = vpop.permute.xlu0 %353
        %355 = vrot.lane.b32.xlu0 %v349, 24
        %v356 = vpop.permute.xlu0 %355
        %357 = vrot.lane.b32.xlu0 %v350, 24
        %v358 = vpop.permute.xlu0 %357
        %vm359 = vcmask 64512
        %v362 = vsel %vm359, %v308, %v325
        %v365 = vsel %vm359, %v309, %v327
        %v368 = vsel %vm359, %v310, %v329
        %v371 = vsel %vm359, %v311, %v331
        %vm372 = vcmask 130048
        %v374 = vsel %vm372, %v362, %v339
        %v376 = vsel %vm372, %v365, %v341
        %v378 = vsel %vm372, %v368, %v343
        %v380 = vsel %vm372, %v371, %v345
        %vm381 = vcmask 195584
        %v383 = vsel %vm381, %v374, %v352
        %v385 = vsel %vm381, %v376, %v354
        %v387 = vsel %vm381, %v378, %v356
        %v389 = vsel %vm381, %v380, %v358
        %v390 = vld [vmem:[%s1] sm:$0xf]
        %v391 = vld [vmem:[%s1 + $0x4] sm:$0xf]
        %v392 = vld [vmem:[%s1 + $0x8] sm:$0xf]
        %v393 = vld [vmem:[%s1 + $0xc] sm:$0xf]
        %v398 = vunpack.c.l.b16 %v390
        %v399 = vunpack.c.l.b16 %v391
        %v400 = vunpack.c.l.b16 %v392
        %v401 = vunpack.c.l.b16 %v393
        %v402 = vpack.c.b16 %v399, %v398
        %v403 = vpack.c.b16 %v401, %v400
        %vm406 = vcmask 261120
        %v407 = vsel %vm406, %v383, 0
        %v409 = vsel %vm406, %v385, 0
        %v411 = vsel %vm406, %v387, 0
        %v413 = vsel %vm406, %v389, 0
        %415 = vmatprep.subr.bf16.mxu0 0
        %416 = vmatpush1.bf16.msra.mxu0 %v402
        %417 = vmatprep.subr.bf16.mxu0 0
        %418 = vmatpush1.bf16.msra.mxu0 %v403
        %419 = vmatprep.subr.bf16.mxu0 0
        %420 = vmatpush1.bf16.msra.mxu0 0
        %421 = vmatprep.subr.bf16.mxu0 0
        %422 = vmatpush1.bf16.msra.mxu0 0
        %423 = vmatprep.subr.bf16.mxu0 0
        %424 = vmatpush1.bf16.msra.mxu0 0
        %425 = vmatprep.subr.bf16.mxu0 0
        %426 = vmatpush1.bf16.msra.mxu0 0
        %427 = vmatprep.subr.bf16.mxu0 0
        %428 = vmatpush1.bf16.msra.mxu0 0
        %429 = vmatprep.subr.bf16.mxu0 0
        %430 = vmatpush1.bf16.msra.mxu0 0
        %431 = vmatprep.subr.bf16.mxu0 0
        %432 = vmatpush1.bf16.msra.mxu0 0
        %433 = vmatprep.subr.bf16.mxu0 0
        %434 = vmatpush1.bf16.msra.mxu0 0
        %435 = vmatprep.subr.bf16.mxu0 0
        %436 = vmatpush1.bf16.msra.mxu0 0
        %437 = vmatprep.subr.bf16.mxu0 0
        %438 = vmatpush1.bf16.msra.mxu0 0
        %439 = vmatprep.subr.bf16.mxu0 0
        %440 = vmatpush1.bf16.msra.mxu0 0
        %441 = vmatprep.subr.bf16.mxu0 0
        %442 = vmatpush1.bf16.msra.mxu0 0
        %443 = vmatprep.subr.bf16.mxu0 0
        %444 = vmatpush1.bf16.msra.mxu0 0
        %445 = vmatprep.subr.bf16.mxu0 0
        %446 = vmatpush1.bf16.msra.mxu0 0
        %447 = vmatprep.mubr.bf16.mxu0 0
        %448 = vmatmul.mubr.bf16.gmra.mrb[0].mxu0 %v407
        %v449 = vpop.f32.mrb[0].mxu0
        %v450 = vadd.f32 0.0, %v449
        %v451 = vpop.f32.mrb[0].mxu0
        %v452 = vpop.f32.mrb[0].mxu0
        %v453 = vadd.f32 0.0, %v452
        %v454 = vpop.f32.mrb[0].mxu0
        %455 = vmatprep.mubr.bf16.mxu0 0
        %456 = vmatmul.mubr.bf16.gmra.mrb[0].mxu0 %v409
        %v457 = vpop.f32.mrb[0].mxu0
        %v458 = vadd.f32 0.0, %v457
        %v459 = vpop.f32.mrb[0].mxu0
        %v460 = vpop.f32.mrb[0].mxu0
        %v461 = vadd.f32 0.0, %v460
        %v462 = vpop.f32.mrb[0].mxu0
        %463 = vmatprep.mubr.bf16.mxu0 0
        %464 = vmatmul.mubr.bf16.gmra.mrb[0].mxu0 %v411
        %v465 = vpop.f32.mrb[0].mxu0
        %v466 = vadd.f32 0.0, %v465
        %v467 = vpop.f32.mrb[0].mxu0
        %v468 = vpop.f32.mrb[0].mxu0
        %v469 = vadd.f32 0.0, %v468
        %v470 = vpop.f32.mrb[0].mxu0
        %471 = vmatprep.mubr.bf16.mxu0 0
        %472 = vmatmul.mubr.bf16.gmra.mrb[0].mxu0 %v413
        %v473 = vpop.f32.mrb[0].mxu0
        %v474 = vadd.f32 0.0, %v473
        %v475 = vpop.f32.mrb[0].mxu0
        %v476 = vpop.f32.mrb[0].mxu0
        %v477 = vadd.f32 0.0, %v476
        %v478 = vpop.f32.mrb[0].mxu0
        %479 = vdwg.mxu0
        %v480 = vsel %vm359, %v450, 0.0
        %v481 = vsel %vm359, %v453, 0.0
        %v482 = vadd.f32 %v480, %v481
        %v483 = vsel %vm359, %v458, 0.0
        %v484 = vadd.f32 %v482, %v483
        %v485 = vsel %vm359, %v461, 0.0
        %v486 = vadd.f32 %v484, %v485
        %v487 = vsel %vm359, %v466, 0.0
        %v488 = vadd.f32 %v486, %v487
        %v489 = vsel %vm359, %v469, 0.0
        %v490 = vadd.f32 %v488, %v489
        %v491 = vsel %vm359, %v474, 0.0
        %v492 = vadd.f32 %v490, %v491
        %v493 = vsel %vm359, %v477, 0.0
        %v494 = vadd.f32 %v492, %v493
        %v495 = vrot.slane %v494, 4
        %v496 = vadd.f32 %v494, %v495
        %v497 = vrot.slane %v496, 2
        %v498 = vadd.f32 %v496, %v497
        %v499 = vrot.slane %v498, 1
        %v500 = vadd.f32 %v498, %v499
        %v501 = vadd.f32 %v500, 0.0
        %v502 = vmul.f32 %v450, %v450
        %v503 = vmul.f32 %v453, %v453
        %v504 = vmul.f32 %v458, %v458
        %v505 = vmul.f32 %v461, %v461
        %v506 = vmul.f32 %v466, %v466
        %v507 = vmul.f32 %v469, %v469
        %v508 = vmul.f32 %v474, %v474
        %v509 = vmul.f32 %v477, %v477
        %v510 = vsel %vm359, %v502, 0.0
        %v511 = vsel %vm359, %v503, 0.0
        %v512 = vadd.f32 %v510, %v511
        %v513 = vsel %vm359, %v504, 0.0
        %v514 = vadd.f32 %v512, %v513
        %v515 = vsel %vm359, %v505, 0.0
        %v516 = vadd.f32 %v514, %v515
        %v517 = vsel %vm359, %v506, 0.0
        %v518 = vadd.f32 %v516, %v517
        %v519 = vsel %vm359, %v507, 0.0
        %v520 = vadd.f32 %v518, %v519
        %v521 = vsel %vm359, %v508, 0.0
        %v522 = vadd.f32 %v520, %v521
        %v523 = vsel %vm359, %v509, 0.0
        %v524 = vadd.f32 %v522, %v523
        %v525 = vrot.slane %v524, 4
        %v526 = vadd.f32 %v524, %v525
        %v527 = vrot.slane %v526, 2
        %v528 = vadd.f32 %v526, %v527
        %v529 = vrot.slane %v528, 1
        %v530 = vadd.f32 %v528, %v529
        %v531 = vadd.f32 %v530, 0.0
        %532 = vst.msk [vmem:[%s136] sm:$0xff] %vm359, %v450
        %533 = vst.msk [vmem:[%s136 + $0x8] sm:$0xff] %vm359, %v453
        %534 = vst.msk [vmem:[%s136 + $0x10] sm:$0xff] %vm359, %v458
        %535 = vst.msk [vmem:[%s136 + $0x18] sm:$0xff] %vm359, %v461
        %536 = vst.msk [vmem:[%s136 + $0x20] sm:$0xff] %vm359, %v466
        %537 = vst.msk [vmem:[%s136 + $0x28] sm:$0xff] %vm359, %v469
        %538 = vst.msk [vmem:[%s136 + $0x30] sm:$0xff] %vm359, %v474
        %539 = vst.msk [vmem:[%s136 + $0x38] sm:$0xff] %vm359, %v477
        %vm548 = vcmask 1042432
        %vm549 = vcmask 1046532
        %vm550 = vmor %vm548, %vm549
        %v551 = vrot.slane %v143, 5
        %v552 = vrot.slane %v551, 4
        %v553 = vrot.slane %v144, 5
        %v554 = vsel %vm550, %v552, %v553
        %v555 = vrot.slane %v145, 5
        %v556 = vrot.slane %v555, 4
        %v557 = vrot.slane %v146, 5
        %v558 = vsel %vm550, %v556, %v557
        %v559 = vrot.slane %v147, 5
        %v560 = vrot.slane %v559, 4
        %v561 = vrot.slane %v148, 5
        %v562 = vsel %vm550, %v560, %v561
        %v563 = vrot.slane %v149, 5
        %v564 = vrot.slane %v563, 4
        %v565 = vrot.slane %v150, 5
        %v566 = vsel %vm550, %v564, %v565
        %v567 = vrot.slane %v151, 5
        %v568 = vrot.slane %v567, 4
        %v569 = vrot.slane %v152, 5
        %v570 = vsel %vm550, %v568, %v569
        %v571 = vrot.slane %v153, 5
        %v572 = vrot.slane %v571, 4
        %v573 = vrot.slane %v154, 5
        %v574 = vsel %vm550, %v572, %v573
        %v575 = vrot.slane %v155, 5
        %v576 = vrot.slane %v575, 4
        %v577 = vrot.slane %v156, 5
        %v578 = vsel %vm550, %v576, %v577
        %v579 = vrot.slane %v157, 5
        %v580 = vrot.slane %v579, 4
        %v581 = vrot.slane %v158, 5
        %v582 = vsel %vm550, %v580, %v581
        %v584 = vrot.slane %v159, 5
        %v585 = vrot.slane %v584, 4
        %v586 = vrot.slane %v160, 5
        %v587 = vsel %vm550, %v585, %v586
        %v588 = vunpack.c.l.b16 %v554
        %v589 = vunpack.c.l.b16 %v558
        %v590 = vunpack.c.l.b16 %v562
        %v591 = vunpack.c.l.b16 %v566
        %v592 = vunpack.c.l.b16 %v570
        %v593 = vunpack.c.l.b16 %v574
        %v594 = vunpack.c.l.b16 %v578
        %v595 = vunpack.c.l.b16 %v582
        %v596 = vpack.c.b16 %v589, %v588
        %v597 = vpack.c.b16 %v591, %v590
        %v598 = vpack.c.b16 %v593, %v592
        %v599 = vpack.c.b16 %v595, %v594
        %600 = vrot.lane.b32.xlu0 %v596, 8
        %v601 = vpop.permute.xlu0 %600
        %602 = vrot.lane.b32.xlu0 %v597, 8
        %v603 = vpop.permute.xlu0 %602
        %604 = vrot.lane.b32.xlu0 %v598, 8
        %v605 = vpop.permute.xlu0 %604
        %606 = vrot.lane.b32.xlu0 %v599, 8
        %v607 = vpop.permute.xlu0 %606
        %608 = vrot.lane.b32.xlu0 %v347, 16
        %v609 = vpop.permute.xlu0 %608
        %610 = vrot.lane.b32.xlu0 %v348, 16
        %v611 = vpop.permute.xlu0 %610
        %612 = vrot.lane.b32.xlu0 %v349, 16
        %v613 = vpop.permute.xlu0 %612
        %614 = vrot.lane.b32.xlu0 %v350, 16
        %v615 = vpop.permute.xlu0 %614
        %v616 = vunpack.c.l.b16 %v587
        %v617 = vpack.c.b16 %v590, %v589
        %v618 = vpack.c.b16 %v592, %v591
        %v619 = vpack.c.b16 %v594, %v593
        %v620 = vpack.c.b16 %v616, %v595
        %621 = vrot.lane.b32.xlu0 %v617, 24
        %v622 = vpop.permute.xlu0 %621
        %623 = vrot.lane.b32.xlu0 %v618, 24
        %v624 = vpop.permute.xlu0 %623
        %625 = vrot.lane.b32.xlu0 %v619, 24
        %v626 = vpop.permute.xlu0 %625
        %627 = vrot.lane.b32.xlu0 %v620, 24
        %v628 = vpop.permute.xlu0 %627
        %v631 = vsel %vm359, %v320, %v601
        %v634 = vsel %vm359, %v321, %v603
        %v637 = vsel %vm359, %v322, %v605
        %v640 = vsel %vm359, %v323, %v607
        %v642 = vsel %vm372, %v631, %v609
        %v644 = vsel %vm372, %v634, %v611
        %v646 = vsel %vm372, %v637, %v613
        %v648 = vsel %vm372, %v640, %v615
        %v650 = vsel %vm381, %v642, %v622
        %v652 = vsel %vm381, %v644, %v624
        %v654 = vsel %vm381, %v646, %v626
        %v656 = vsel %vm381, %v648, %v628
        %s657 = scalar_lea.vmem %s1, 16
        %v658 = vld [vmem:[%s657] sm:$0xf]
        %v659 = vld [vmem:[%s657 + $0x4] sm:$0xf]
        %v660 = vld [vmem:[%s657 + $0x8] sm:$0xf]
        %v661 = vld [vmem:[%s657 + $0xc] sm:$0xf]
        %v666 = vunpack.c.l.b16 %v658
        %v667 = vunpack.c.l.b16 %v659
        %v668 = vunpack.c.l.b16 %v660
        %v669 = vunpack.c.l.b16 %v661
        %v670 = vpack.c.b16 %v667, %v666
        %v671 = vpack.c.b16 %v669, %v668
        %v674 = vsel %vm406, %v650, 0
        %v676 = vsel %vm406, %v652, 0
        %v678 = vsel %vm406, %v654, 0
        %v680 = vsel %vm406, %v656, 0
        %682 = vmatprep.subr.bf16.mxu0 0
        %683 = vmatpush1.bf16.msra.mxu0 %v670
        %684 = vmatprep.subr.bf16.mxu0 0
        %685 = vmatpush1.bf16.msra.mxu0 %v671
        %686 = vmatprep.subr.bf16.mxu0 0
        %687 = vmatpush1.bf16.msra.mxu0 0
        %688 = vmatprep.subr.bf16.mxu0 0
        %689 = vmatpush1.bf16.msra.mxu0 0
        %690 = vmatprep.subr.bf16.mxu0 0
        %691 = vmatpush1.bf16.msra.mxu0 0
        %692 = vmatprep.subr.bf16.mxu0 0
        %693 = vmatpush1.bf16.msra.mxu0 0
        %694 = vmatprep.subr.bf16.mxu0 0
        %695 = vmatpush1.bf16.msra.mxu0 0
        %696 = vmatprep.subr.bf16.mxu0 0
        %697 = vmatpush1.bf16.msra.mxu0 0
        %698 = vmatprep.subr.bf16.mxu0 0
        %699 = vmatpush1.bf16.msra.mxu0 0
        %700 = vmatprep.subr.bf16.mxu0 0
        %701 = vmatpush1.bf16.msra.mxu0 0
        %702 = vmatprep.subr.bf16.mxu0 0
        %703 = vmatpush1.bf16.msra.mxu0 0
        %704 = vmatprep.subr.bf16.mxu0 0
        %705 = vmatpush1.bf16.msra.mxu0 0
        %706 = vmatprep.subr.bf16.mxu0 0
        %707 = vmatpush1.bf16.msra.mxu0 0
        %708 = vmatprep.subr.bf16.mxu0 0
        %709 = vmatpush1.bf16.msra.mxu0 0
        %710 = vmatprep.subr.bf16.mxu0 0
        %711 = vmatpush1.bf16.msra.mxu0 0
        %712 = vmatprep.subr.bf16.mxu0 0
        %713 = vmatpush1.bf16.msra.mxu0 0
        %714 = vmatprep.mubr.bf16.mxu0 0
        %715 = vmatmul.mubr.bf16.gmra.mrb[0].mxu0 %v674
        %v716 = vpop.f32.mrb[0].mxu0
        %v717 = vadd.f32 0.0, %v716
        %v718 = vpop.f32.mrb[0].mxu0
        %v719 = vpop.f32.mrb[0].mxu0
        %v720 = vadd.f32 0.0, %v719
        %v721 = vpop.f32.mrb[0].mxu0
        %722 = vmatprep.mubr.bf16.mxu0 0
        %723 = vmatmul.mubr.bf16.gmra.mrb[0].mxu0 %v676
        %v724 = vpop.f32.mrb[0].mxu0
        %v725 = vadd.f32 0.0, %v724
        %v726 = vpop.f32.mrb[0].mxu0
        %v727 = vpop.f32.mrb[0].mxu0
        %v728 = vadd.f32 0.0, %v727
        %v729 = vpop.f32.mrb[0].mxu0
        %730 = vmatprep.mubr.bf16.mxu0 0
        %731 = vmatmul.mubr.bf16.gmra.mrb[0].mxu0 %v678
        %v732 = vpop.f32.mrb[0].mxu0
        %v733 = vadd.f32 0.0, %v732
        %v734 = vpop.f32.mrb[0].mxu0
        %v735 = vpop.f32.mrb[0].mxu0
        %v736 = vadd.f32 0.0, %v735
        %v737 = vpop.f32.mrb[0].mxu0
        %738 = vmatprep.mubr.bf16.mxu0 0
        %739 = vmatmul.mubr.bf16.gmra.mrb[0].mxu0 %v680
        %v740 = vpop.f32.mrb[0].mxu0
        %v741 = vadd.f32 0.0, %v740
        %v742 = vpop.f32.mrb[0].mxu0
        %v743 = vpop.f32.mrb[0].mxu0
        %v744 = vadd.f32 0.0, %v743
        %v745 = vpop.f32.mrb[0].mxu0
        %746 = vdwg.mxu0
        %v747 = vsel %vm359, %v717, 0.0
        %v748 = vsel %vm359, %v720, 0.0
        %v749 = vadd.f32 %v747, %v748
        %v750 = vsel %vm359, %v725, 0.0
        %v751 = vadd.f32 %v749, %v750
        %v752 = vsel %vm359, %v728, 0.0
        %v753 = vadd.f32 %v751, %v752
        %v754 = vsel %vm359, %v733, 0.0
        %v755 = vadd.f32 %v753, %v754
        %v756 = vsel %vm359, %v736, 0.0
        %v757 = vadd.f32 %v755, %v756
        %v758 = vsel %vm359, %v741, 0.0
        %v759 = vadd.f32 %v757, %v758
        %v760 = vsel %vm359, %v744, 0.0
        %v761 = vadd.f32 %v759, %v760
        %v762 = vrot.slane %v761, 4
        %v763 = vadd.f32 %v761, %v762
        %v764 = vrot.slane %v763, 2
        %v765 = vadd.f32 %v763, %v764
        %v766 = vrot.slane %v765, 1
        %v767 = vadd.f32 %v765, %v766
        %v768 = vadd.f32 %v501, %v767
        %v769 = vmul.f32 %v717, %v717
        %v770 = vmul.f32 %v720, %v720
        %v771 = vmul.f32 %v725, %v725
        %v772 = vmul.f32 %v728, %v728
        %v773 = vmul.f32 %v733, %v733
        %v774 = vmul.f32 %v736, %v736
        %v775 = vmul.f32 %v741, %v741
        %v776 = vmul.f32 %v744, %v744
        %v777 = vsel %vm359, %v769, 0.0
        %v778 = vsel %vm359, %v770, 0.0
        %v779 = vadd.f32 %v777, %v778
        %v780 = vsel %vm359, %v771, 0.0
        %v781 = vadd.f32 %v779, %v780
        %v782 = vsel %vm359, %v772, 0.0
        %v783 = vadd.f32 %v781, %v782
        %v784 = vsel %vm359, %v773, 0.0
        %v785 = vadd.f32 %v783, %v784
        %v786 = vsel %vm359, %v774, 0.0
        %v787 = vadd.f32 %v785, %v786
        %v788 = vsel %vm359, %v775, 0.0
        %v789 = vadd.f32 %v787, %v788
        %v790 = vsel %vm359, %v776, 0.0
        %v791 = vadd.f32 %v789, %v790
        %v792 = vrot.slane %v791, 4
        %v793 = vadd.f32 %v791, %v792
        %v794 = vrot.slane %v793, 2
        %v795 = vadd.f32 %v793, %v794
        %v796 = vrot.slane %v795, 1
        %v797 = vadd.f32 %v795, %v796
        %v798 = vadd.f32 %v531, %v797
        %807 = vrot.lane.b32.xlu0 %v717, 8
        %v808 = vpop.permute.xlu0 %807
        %809 = vrot.lane.b32.xlu0 %v720, 8
        %v810 = vpop.permute.xlu0 %809
        %811 = vrot.lane.b32.xlu0 %v725, 8
        %v812 = vpop.permute.xlu0 %811
        %813 = vrot.lane.b32.xlu0 %v728, 8
        %v814 = vpop.permute.xlu0 %813
        %815 = vrot.lane.b32.xlu0 %v733, 8
        %v816 = vpop.permute.xlu0 %815
        %817 = vrot.lane.b32.xlu0 %v736, 8
        %v818 = vpop.permute.xlu0 %817
        %819 = vrot.lane.b32.xlu0 %v741, 8
        %v820 = vpop.permute.xlu0 %819
        %821 = vrot.lane.b32.xlu0 %v744, 8
        %v822 = vpop.permute.xlu0 %821
        %vm831 = vcmask 130112
        %832 = vst.msk [vmem:[%s136] sm:$0xff] %vm831, %v808
        %833 = vst.msk [vmem:[%s136 + $0x8] sm:$0xff] %vm831, %v810
        %834 = vst.msk [vmem:[%s136 + $0x10] sm:$0xff] %vm831, %v812
        %835 = vst.msk [vmem:[%s136 + $0x18] sm:$0xff] %vm831, %v814
        %836 = vst.msk [vmem:[%s136 + $0x20] sm:$0xff] %vm831, %v816
        %837 = vst.msk [vmem:[%s136 + $0x28] sm:$0xff] %vm831, %v818
        %838 = vst.msk [vmem:[%s136 + $0x30] sm:$0xff] %vm831, %v820
        %839 = vst.msk [vmem:[%s136 + $0x38] sm:$0xff] %vm831, %v822
        %v841 = vshrl.u32 %v161, 16
        %v843 = vrot.slane %v841, 4
        %v844 = vshll.u32 %v161, 16
        %v846 = vrot.slane %v844, 5
        %v847 = vor.u32 %v843, %v846
        %v848 = vrot.slane %v847, 4
        %v850 = vshll.u32 %v162, 16
        %v852 = vrot.slane %v850, 5
        %v853 = vsel %vm165, %v848, %v852
        %854 = vrot.lane.b32.xlu0 %v347, 8
        %v855 = vpop.permute.xlu0 %854
        %856 = vrot.lane.b32.xlu0 %v348, 8
        %v857 = vpop.permute.xlu0 %856
        %858 = vrot.lane.b32.xlu0 %v349, 8
        %v859 = vpop.permute.xlu0 %858
        %860 = vrot.lane.b32.xlu0 %v350, 8
        %v861 = vpop.permute.xlu0 %860
        %v863 = vunpack.c.l.b16 %v161
        %v864 = vpack.c.b16 %v863, %v333
        %865 = vrot.lane.b32.xlu0 %v309, 16
        %v866 = vpop.permute.xlu0 %865
        %867 = vrot.lane.b32.xlu0 %v310, 16
        %v868 = vpop.permute.xlu0 %867
        %869 = vrot.lane.b32.xlu0 %v311, 16
        %v870 = vpop.permute.xlu0 %869
        %871 = vrot.lane.b32.xlu0 %v864, 16
        %v872 = vpop.permute.xlu0 %871
        %v873 = vunpack.c.l.b16 %v853
        %v874 = vpack.c.b16 %v873, %v346
        %875 = vrot.lane.b32.xlu0 %v321, 24
        %v876 = vpop.permute.xlu0 %875
        %877 = vrot.lane.b32.xlu0 %v322, 24
        %v878 = vpop.permute.xlu0 %877
        %879 = vrot.lane.b32.xlu0 %v323, 24
        %v880 = vpop.permute.xlu0 %879
        %881 = vrot.lane.b32.xlu0 %v874, 24
        %v882 = vpop.permute.xlu0 %881
        %v885 = vsel %vm359, %v334, %v855
        %v888 = vsel %vm359, %v335, %v857
        %v891 = vsel %vm359, %v336, %v859
        %v894 = vsel %vm359, %v337, %v861
        %v896 = vsel %vm372, %v885, %v866
        %v898 = vsel %vm372, %v888, %v868
        %v900 = vsel %vm372, %v891, %v870
        %v902 = vsel %vm372, %v894, %v872
        %v904 = vsel %vm381, %v896, %v876
        %v906 = vsel %vm381, %v898, %v878
        %v908 = vsel %vm381, %v900, %v880
        %v910 = vsel %vm381, %v902, %v882
        %s911 = scalar_lea.vmem %s1, 32
        %v912 = vld [vmem:[%s911] sm:$0xf]
        %v913 = vld [vmem:[%s911 + $0x4] sm:$0xf]
        %v914 = vld [vmem:[%s911 + $0x8] sm:$0xf]
        %v915 = vld [vmem:[%s911 + $0xc] sm:$0xf]
        %v920 = vunpack.c.l.b16 %v912
        %v921 = vunpack.c.l.b16 %v913
        %v922 = vunpack.c.l.b16 %v914
        %v923 = vunpack.c.l.b16 %v915
        %v924 = vpack.c.b16 %v921, %v920
        %v925 = vpack.c.b16 %v923, %v922
        %v928 = vsel %vm406, %v904, 0
        %v930 = vsel %vm406, %v906, 0
        %v932 = vsel %vm406, %v908, 0
        %v934 = vsel %vm406, %v910, 0
        %936 = vmatprep.subr.bf16.mxu0 0
        %937 = vmatpush1.bf16.msra.mxu0 %v924
        %938 = vmatprep.subr.bf16.mxu0 0
        %939 = vmatpush1.bf16.msra.mxu0 %v925
        %940 = vmatprep.subr.bf16.mxu0 0
        %941 = vmatpush1.bf16.msra.mxu0 0
        %942 = vmatprep.subr.bf16.mxu0 0
        %943 = vmatpush1.bf16.msra.mxu0 0
        %944 = vmatprep.subr.bf16.mxu0 0
        %945 = vmatpush1.bf16.msra.mxu0 0
        %946 = vmatprep.subr.bf16.mxu0 0
        %947 = vmatpush1.bf16.msra.mxu0 0
        %948 = vmatprep.subr.bf16.mxu0 0
        %949 = vmatpush1.bf16.msra.mxu0 0
        %950 = vmatprep.subr.bf16.mxu0 0
        %951 = vmatpush1.bf16.msra.mxu0 0
        %952 = vmatprep.subr.bf16.mxu0 0
        %953 = vmatpush1.bf16.msra.mxu0 0
        %954 = vmatprep.subr.bf16.mxu0 0
        %955 = vmatpush1.bf16.msra.mxu0 0
        %956 = vmatprep.subr.bf16.mxu0 0
        %957 = vmatpush1.bf16.msra.mxu0 0
        %958 = vmatprep.subr.bf16.mxu0 0
        %959 = vmatpush1.bf16.msra.mxu0 0
        %960 = vmatprep.subr.bf16.mxu0 0
        %961 = vmatpush1.bf16.msra.mxu0 0
        %962 = vmatprep.subr.bf16.mxu0 0
        %963 = vmatpush1.bf16.msra.mxu0 0
        %964 = vmatprep.subr.bf16.mxu0 0
        %965 = vmatpush1.bf16.msra.mxu0 0
        %966 = vmatprep.subr.bf16.mxu0 0
        %967 = vmatpush1.bf16.msra.mxu0 0
        %968 = vmatprep.mubr.bf16.mxu0 0
        %969 = vmatmul.mubr.bf16.gmra.mrb[0].mxu0 %v928
        %v970 = vpop.f32.mrb[0].mxu0
        %v971 = vadd.f32 0.0, %v970
        %v972 = vpop.f32.mrb[0].mxu0
        %v973 = vpop.f32.mrb[0].mxu0
        %v974 = vadd.f32 0.0, %v973
        %v975 = vpop.f32.mrb[0].mxu0
        %976 = vmatprep.mubr.bf16.mxu0 0
        %977 = vmatmul.mubr.bf16.gmra.mrb[0].mxu0 %v930
        %v978 = vpop.f32.mrb[0].mxu0
        %v979 = vadd.f32 0.0, %v978
        %v980 = vpop.f32.mrb[0].mxu0
        %v981 = vpop.f32.mrb[0].mxu0
        %v982 = vadd.f32 0.0, %v981
        %v983 = vpop.f32.mrb[0].mxu0
        %984 = vmatprep.mubr.bf16.mxu0 0
        %985 = vmatmul.mubr.bf16.gmra.mrb[0].mxu0 %v932
        %v986 = vpop.f32.mrb[0].mxu0
        %v987 = vadd.f32 0.0, %v986
        %v988 = vpop.f32.mrb[0].mxu0
        %v989 = vpop.f32.mrb[0].mxu0
        %v990 = vadd.f32 0.0, %v989
        %v991 = vpop.f32.mrb[0].mxu0
        %992 = vmatprep.mubr.bf16.mxu0 0
        %993 = vmatmul.mubr.bf16.gmra.mrb[0].mxu0 %v934
        %v994 = vpop.f32.mrb[0].mxu0
        %v995 = vadd.f32 0.0, %v994
        %v996 = vpop.f32.mrb[0].mxu0
        %v997 = vpop.f32.mrb[0].mxu0
        %v998 = vadd.f32 0.0, %v997
        %v999 = vpop.f32.mrb[0].mxu0
        %1000 = vdwg.mxu0
        %v1001 = vsel %vm359, %v971, 0.0
        %v1002 = vsel %vm359, %v974, 0.0
        %v1003 = vadd.f32 %v1001, %v1002
        %v1004 = vsel %vm359, %v979, 0.0
        %v1005 = vadd.f32 %v1003, %v1004
        %v1006 = vsel %vm359, %v982, 0.0
        %v1007 = vadd.f32 %v1005, %v1006
        %v1008 = vsel %vm359, %v987, 0.0
        %v1009 = vadd.f32 %v1007, %v1008
        %v1010 = vsel %vm359, %v990, 0.0
        %v1011 = vadd.f32 %v1009, %v1010
        %v1012 = vsel %vm359, %v995, 0.0
        %v1013 = vadd.f32 %v1011, %v1012
        %v1014 = vsel %vm359, %v998, 0.0
        %v1015 = vadd.f32 %v1013, %v1014
        %v1016 = vrot.slane %v1015, 4
        %v1017 = vadd.f32 %v1015, %v1016
        %v1018 = vrot.slane %v1017, 2
        %v1019 = vadd.f32 %v1017, %v1018
        %v1020 = vrot.slane %v1019, 1
        %v1021 = vadd.f32 %v1019, %v1020
        %v1022 = vadd.f32 %v768, %v1021
        %v1023 = vmul.f32 %v971, %v971
        %v1024 = vmul.f32 %v974, %v974
        %v1025 = vmul.f32 %v979, %v979
        %v1026 = vmul.f32 %v982, %v982
        %v1027 = vmul.f32 %v987, %v987
        %v1028 = vmul.f32 %v990, %v990
        %v1029 = vmul.f32 %v995, %v995
        %v1030 = vmul.f32 %v998, %v998
        %v1031 = vsel %vm359, %v1023, 0.0
        %v1032 = vsel %vm359, %v1024, 0.0
        %v1033 = vadd.f32 %v1031, %v1032
        %v1034 = vsel %vm359, %v1025, 0.0
        %v1035 = vadd.f32 %v1033, %v1034
        %v1036 = vsel %vm359, %v1026, 0.0
        %v1037 = vadd.f32 %v1035, %v1036
        %v1038 = vsel %vm359, %v1027, 0.0
        %v1039 = vadd.f32 %v1037, %v1038
        %v1040 = vsel %vm359, %v1028, 0.0
        %v1041 = vadd.f32 %v1039, %v1040
        %v1042 = vsel %vm359, %v1029, 0.0
        %v1043 = vadd.f32 %v1041, %v1042
        %v1044 = vsel %vm359, %v1030, 0.0
        %v1045 = vadd.f32 %v1043, %v1044
        %v1046 = vrot.slane %v1045, 4
        %v1047 = vadd.f32 %v1045, %v1046
        %v1048 = vrot.slane %v1047, 2
        %v1049 = vadd.f32 %v1047, %v1048
        %v1050 = vrot.slane %v1049, 1
        %v1051 = vadd.f32 %v1049, %v1050
        %v1052 = vadd.f32 %v798, %v1051
        %1061 = vrot.lane.b32.xlu0 %v971, 16
        %v1062 = vpop.permute.xlu0 %1061
        %1063 = vrot.lane.b32.xlu0 %v974, 16
        %v1064 = vpop.permute.xlu0 %1063
        %1065 = vrot.lane.b32.xlu0 %v979, 16
        %v1066 = vpop.permute.xlu0 %1065
        %1067 = vrot.lane.b32.xlu0 %v982, 16
        %v1068 = vpop.permute.xlu0 %1067
        %1069 = vrot.lane.b32.xlu0 %v987, 16
        %v1070 = vpop.permute.xlu0 %1069
        %1071 = vrot.lane.b32.xlu0 %v990, 16
        %v1072 = vpop.permute.xlu0 %1071
        %1073 = vrot.lane.b32.xlu0 %v995, 16
        %v1074 = vpop.permute.xlu0 %1073
        %1075 = vrot.lane.b32.xlu0 %v998, 16
        %v1076 = vpop.permute.xlu0 %1075
        %vm1085 = vcmask 195712
        %1086 = vst.msk [vmem:[%s136] sm:$0xff] %vm1085, %v1062
        %1087 = vst.msk [vmem:[%s136 + $0x8] sm:$0xff] %vm1085, %v1064
        %1088 = vst.msk [vmem:[%s136 + $0x10] sm:$0xff] %vm1085, %v1066
        %1089 = vst.msk [vmem:[%s136 + $0x18] sm:$0xff] %vm1085, %v1068
        %1090 = vst.msk [vmem:[%s136 + $0x20] sm:$0xff] %vm1085, %v1070
        %1091 = vst.msk [vmem:[%s136 + $0x28] sm:$0xff] %vm1085, %v1072
        %1092 = vst.msk [vmem:[%s136 + $0x30] sm:$0xff] %vm1085, %v1074
        %1093 = vst.msk [vmem:[%s136 + $0x38] sm:$0xff] %vm1085, %v1076
        %v1095 = vrot.slane %v161, 5
        %v1096 = vrot.slane %v1095, 4
        %v1097 = vrot.slane %v162, 5
        %v1098 = vsel %vm550, %v1096, %v1097
        %1099 = vrot.lane.b32.xlu0 %v617, 8
        %v1100 = vpop.permute.xlu0 %1099
        %1101 = vrot.lane.b32.xlu0 %v618, 8
        %v1102 = vpop.permute.xlu0 %1101
        %1103 = vrot.lane.b32.xlu0 %v619, 8
        %v1104 = vpop.permute.xlu0 %1103
        %1105 = vrot.lane.b32.xlu0 %v620, 8
        %v1106 = vpop.permute.xlu0 %1105
        %1107 = vrot.lane.b32.xlu0 %v321, 16
        %v1108 = vpop.permute.xlu0 %1107
        %1109 = vrot.lane.b32.xlu0 %v322, 16
        %v1110 = vpop.permute.xlu0 %1109
        %1111 = vrot.lane.b32.xlu0 %v323, 16
        %v1112 = vpop.permute.xlu0 %1111
        %1113 = vrot.lane.b32.xlu0 %v874, 16
        %v1114 = vpop.permute.xlu0 %1113
        %v1115 = vunpack.c.l.b16 %v1098
        %v1116 = vpack.c.b16 %v1115, %v616
        %1117 = vrot.lane.b32.xlu0 %v597, 24
        %v1118 = vpop.permute.xlu0 %1117
        %1119 = vrot.lane.b32.xlu0 %v598, 24
        %v1120 = vpop.permute.xlu0 %1119
        %1121 = vrot.lane.b32.xlu0 %v599, 24
        %v1122 = vpop.permute.xlu0 %1121
        %1123 = vrot.lane.b32.xlu0 %v1116, 24
        %v1124 = vpop.permute.xlu0 %1123
        %v1127 = vsel %vm359, %v347, %v1100
        %v1130 = vsel %vm359, %v348, %v1102
        %v1133 = vsel %vm359, %v349, %v1104
        %v1136 = vsel %vm359, %v350, %v1106
        %v1138 = vsel %vm372, %v1127, %v1108
        %v1140 = vsel %vm372, %v1130, %v1110
        %v1142 = vsel %vm372, %v1133, %v1112
        %v1144 = vsel %vm372, %v1136, %v1114
        %v1146 = vsel %vm381, %v1138, %v1118
        %v1148 = vsel %vm381, %v1140, %v1120
        %v1150 = vsel %vm381, %v1142, %v1122
        %v1152 = vsel %vm381, %v1144, %v1124
        %s1153 = scalar_lea.vmem %s1, 48
        %v1154 = vld [vmem:[%s1153] sm:$0xf]
        %v1155 = vld [vmem:[%s1153 + $0x4] sm:$0xf]
        %v1156 = vld [vmem:[%s1153 + $0x8] sm:$0xf]
        %v1157 = vld [vmem:[%s1153 + $0xc] sm:$0xf]
        %v1162 = vunpack.c.l.b16 %v1154
        %v1163 = vunpack.c.l.b16 %v1155
        %v1164 = vunpack.c.l.b16 %v1156
        %v1165 = vunpack.c.l.b16 %v1157
        %v1166 = vpack.c.b16 %v1163, %v1162
        %v1167 = vpack.c.b16 %v1165, %v1164
        %v1170 = vsel %vm406, %v1146, 0
        %v1172 = vsel %vm406, %v1148, 0
        %v1174 = vsel %vm406, %v1150, 0
        %v1176 = vsel %vm406, %v1152, 0
        %1178 = vmatprep.subr.bf16.mxu0 0
        %1179 = vmatpush1.bf16.msra.mxu0 %v1166
        %1180 = vmatprep.subr.bf16.mxu0 0
        %1181 = vmatpush1.bf16.msra.mxu0 %v1167
        %1182 = vmatprep.subr.bf16.mxu0 0
        %1183 = vmatpush1.bf16.msra.mxu0 0
        %1184 = vmatprep.subr.bf16.mxu0 0
        %1185 = vmatpush1.bf16.msra.mxu0 0
        %1186 = vmatprep.subr.bf16.mxu0 0
        %1187 = vmatpush1.bf16.msra.mxu0 0
        %1188 = vmatprep.subr.bf16.mxu0 0
        %1189 = vmatpush1.bf16.msra.mxu0 0
        %1190 = vmatprep.subr.bf16.mxu0 0
        %1191 = vmatpush1.bf16.msra.mxu0 0
        %1192 = vmatprep.subr.bf16.mxu0 0
        %1193 = vmatpush1.bf16.msra.mxu0 0
        %1194 = vmatprep.subr.bf16.mxu0 0
        %1195 = vmatpush1.bf16.msra.mxu0 0
        %1196 = vmatprep.subr.bf16.mxu0 0
        %1197 = vmatpush1.bf16.msra.mxu0 0
        %1198 = vmatprep.subr.bf16.mxu0 0
        %1199 = vmatpush1.bf16.msra.mxu0 0
        %1200 = vmatprep.subr.bf16.mxu0 0
        %1201 = vmatpush1.bf16.msra.mxu0 0
        %1202 = vmatprep.subr.bf16.mxu0 0
        %1203 = vmatpush1.bf16.msra.mxu0 0
        %1204 = vmatprep.subr.bf16.mxu0 0
        %1205 = vmatpush1.bf16.msra.mxu0 0
        %1206 = vmatprep.subr.bf16.mxu0 0
        %1207 = vmatpush1.bf16.msra.mxu0 0
        %1208 = vmatprep.subr.bf16.mxu0 0
        %1209 = vmatpush1.bf16.msra.mxu0 0
        %1210 = vmatprep.mubr.bf16.mxu0 0
        %1211 = vmatmul.mubr.bf16.gmra.mrb[0].mxu0 %v1170
        %v1212 = vpop.f32.mrb[0].mxu0
        %v1213 = vadd.f32 0.0, %v1212
        %v1214 = vpop.f32.mrb[0].mxu0
        %v1215 = vpop.f32.mrb[0].mxu0
        %v1216 = vadd.f32 0.0, %v1215
        %v1217 = vpop.f32.mrb[0].mxu0
        %1218 = vmatprep.mubr.bf16.mxu0 0
        %1219 = vmatmul.mubr.bf16.gmra.mrb[0].mxu0 %v1172
        %v1220 = vpop.f32.mrb[0].mxu0
        %v1221 = vadd.f32 0.0, %v1220
        %v1222 = vpop.f32.mrb[0].mxu0
        %v1223 = vpop.f32.mrb[0].mxu0
        %v1224 = vadd.f32 0.0, %v1223
        %v1225 = vpop.f32.mrb[0].mxu0
        %1226 = vmatprep.mubr.bf16.mxu0 0
        %1227 = vmatmul.mubr.bf16.gmra.mrb[0].mxu0 %v1174
        %v1228 = vpop.f32.mrb[0].mxu0
        %v1229 = vadd.f32 0.0, %v1228
        %v1230 = vpop.f32.mrb[0].mxu0
        %v1231 = vpop.f32.mrb[0].mxu0
        %v1232 = vadd.f32 0.0, %v1231
        %v1233 = vpop.f32.mrb[0].mxu0
        %1234 = vmatprep.mubr.bf16.mxu0 0
        %1235 = vmatmul.mubr.bf16.gmra.mrb[0].mxu0 %v1176
        %v1236 = vpop.f32.mrb[0].mxu0
        %v1237 = vadd.f32 0.0, %v1236
        %v1238 = vpop.f32.mrb[0].mxu0
        %v1239 = vpop.f32.mrb[0].mxu0
        %v1240 = vadd.f32 0.0, %v1239
        %v1241 = vpop.f32.mrb[0].mxu0
        %1242 = vdwg.mxu0
        %v1243 = vsel %vm359, %v1213, 0.0
        %v1244 = vsel %vm359, %v1216, 0.0
        %v1245 = vadd.f32 %v1243, %v1244
        %v1246 = vsel %vm359, %v1221, 0.0
        %v1247 = vadd.f32 %v1245, %v1246
        %v1248 = vsel %vm359, %v1224, 0.0
        %v1249 = vadd.f32 %v1247, %v1248
        %v1250 = vsel %vm359, %v1229, 0.0
        %v1251 = vadd.f32 %v1249, %v1250
        %v1252 = vsel %vm359, %v1232, 0.0
        %v1253 = vadd.f32 %v1251, %v1252
        %v1254 = vsel %vm359, %v1237, 0.0
        %v1255 = vadd.f32 %v1253, %v1254
        %v1256 = vsel %vm359, %v1240, 0.0
        %v1257 = vadd.f32 %v1255, %v1256
        %v1258 = vrot.slane %v1257, 4
        %v1259 = vadd.f32 %v1257, %v1258
        %v1260 = vrot.slane %v1259, 2
        %v1261 = vadd.f32 %v1259, %v1260
        %v1262 = vrot.slane %v1261, 1
        %v1263 = vadd.f32 %v1261, %v1262
        %v1264 = vadd.f32 %v1022, %v1263
        %v1265 = vmul.f32 %v1213, %v1213
        %v1266 = vmul.f32 %v1216, %v1216
        %v1267 = vmul.f32 %v1221, %v1221
        %v1268 = vmul.f32 %v1224, %v1224
        %v1269 = vmul.f32 %v1229, %v1229
        %v1270 = vmul.f32 %v1232, %v1232
        %v1271 = vmul.f32 %v1237, %v1237
        %v1272 = vmul.f32 %v1240, %v1240
        %v1273 = vsel %vm359, %v1265, 0.0
        %v1274 = vsel %vm359, %v1266, 0.0
        %v1275 = vadd.f32 %v1273, %v1274
        %v1276 = vsel %vm359, %v1267, 0.0
        %v1277 = vadd.f32 %v1275, %v1276
        %v1278 = vsel %vm359, %v1268, 0.0
        %v1279 = vadd.f32 %v1277, %v1278
        %v1280 = vsel %vm359, %v1269, 0.0
        %v1281 = vadd.f32 %v1279, %v1280
        %v1282 = vsel %vm359, %v1270, 0.0
        %v1283 = vadd.f32 %v1281, %v1282
        %v1284 = vsel %vm359, %v1271, 0.0
        %v1285 = vadd.f32 %v1283, %v1284
        %v1286 = vsel %vm359, %v1272, 0.0
        %v1287 = vadd.f32 %v1285, %v1286
        %v1288 = vrot.slane %v1287, 4
        %v1289 = vadd.f32 %v1287, %v1288
        %v1290 = vrot.slane %v1289, 2
        %v1291 = vadd.f32 %v1289, %v1290
        %v1292 = vrot.slane %v1291, 1
        %v1293 = vadd.f32 %v1291, %v1292
        %v1294 = vadd.f32 %v1052, %v1293
        %1303 = vrot.lane.b32.xlu0 %v1213, 24
        %v1304 = vpop.permute.xlu0 %1303
        %1305 = vrot.lane.b32.xlu0 %v1216, 24
        %v1306 = vpop.permute.xlu0 %1305
        %1307 = vrot.lane.b32.xlu0 %v1221, 24
        %v1308 = vpop.permute.xlu0 %1307
        %1309 = vrot.lane.b32.xlu0 %v1224, 24
        %v1310 = vpop.permute.xlu0 %1309
        %1311 = vrot.lane.b32.xlu0 %v1229, 24
        %v1312 = vpop.permute.xlu0 %1311
        %1313 = vrot.lane.b32.xlu0 %v1232, 24
        %v1314 = vpop.permute.xlu0 %1313
        %1315 = vrot.lane.b32.xlu0 %v1237, 24
        %v1316 = vpop.permute.xlu0 %1315
        %1317 = vrot.lane.b32.xlu0 %v1240, 24
        %v1318 = vpop.permute.xlu0 %1317
        %vm1327 = vcmask 261312
        %1328 = vst.msk [vmem:[%s136] sm:$0xff] %vm1327, %v1304
        %1329 = vst.msk [vmem:[%s136 + $0x8] sm:$0xff] %vm1327, %v1306
        %1330 = vst.msk [vmem:[%s136 + $0x10] sm:$0xff] %vm1327, %v1308
        %1331 = vst.msk [vmem:[%s136 + $0x18] sm:$0xff] %vm1327, %v1310
        %1332 = vst.msk [vmem:[%s136 + $0x20] sm:$0xff] %vm1327, %v1312
        %1333 = vst.msk [vmem:[%s136 + $0x28] sm:$0xff] %vm1327, %v1314
        %1334 = vst.msk [vmem:[%s136 + $0x30] sm:$0xff] %vm1327, %v1316
        %1335 = vst.msk [vmem:[%s136 + $0x38] sm:$0xff] %vm1327, %v1318
        %v1336 = vmul.f32 %v1264, 0.00390625
        %v1337 = vmul.f32 %v1294, 0.00390625
        %v1338 = vmul.f32 %v1336, %v1336
        %v1339 = vsub.f32 %v1337, %v1338
        %v1340 = vadd.f32 %v1339, 1e-05
        %v1341 = vrsqrt.pop %v1340
        %v1342 = vsub.f32 0.0, %v1336
        %v1343 = vmul.f32 %v1342, %v1341
        %1345 = vrot.lane.b32.xlu0 %v1341, 8
        %v1346 = vpop.permute.xlu0 %1345
        %1348 = vrot.lane.b32.xlu0 %v1341, 16
        %v1349 = vpop.permute.xlu0 %1348
        %1351 = vrot.lane.b32.xlu0 %v1341, 24
        %v1352 = vpop.permute.xlu0 %1351
        %v1354 = vsel %vm359, %v1341, %v1346
        %v1355 = vsel %vm372, %v1354, %v1349
        %v1356 = vsel %vm381, %v1355, %v1352
        %1358 = vrot.lane.b32.xlu0 %v1343, 8
        %v1359 = vpop.permute.xlu0 %1358
        %1361 = vrot.lane.b32.xlu0 %v1343, 16
        %v1362 = vpop.permute.xlu0 %1361
        %1364 = vrot.lane.b32.xlu0 %v1343, 24
        %v1365 = vpop.permute.xlu0 %1364
        %v1367 = vsel %vm359, %v1343, %v1359
        %v1368 = vsel %vm372, %v1367, %v1362
        %v1369 = vsel %vm381, %v1368, %v1365
        %v1370 = vld [vmem:[%s136] sm:$0xff]
        %v1371 = vld [vmem:[%s136 + $0x8] sm:$0xff]
        %v1372 = vld [vmem:[%s136 + $0x10] sm:$0xff]
        %v1373 = vld [vmem:[%s136 + $0x18] sm:$0xff]
        %v1374 = vld [vmem:[%s136 + $0x20] sm:$0xff]
        %v1375 = vld [vmem:[%s136 + $0x28] sm:$0xff]
        %v1376 = vld [vmem:[%s136 + $0x30] sm:$0xff]
        %v1377 = vld [vmem:[%s136 + $0x38] sm:$0xff]
        %v1378 = vlaneseq
        %v1379 = vshrl.u32 %v1378, 7
        %v1380 = vsub.s32 0, %v1379
        %v1381 = vrot.slane %v1356, %v1380
        %v1382 = vmul.f32 %v1370, %v1381
        %v1383 = vmul.f32 %v1371, %v1381
        %v1384 = vmul.f32 %v1372, %v1381
        %v1385 = vmul.f32 %v1373, %v1381
        %v1386 = vmul.f32 %v1374, %v1381
        %v1387 = vmul.f32 %v1375, %v1381
        %v1388 = vmul.f32 %v1376, %v1381
        %v1389 = vmul.f32 %v1377, %v1381
        %v1390 = vlaneseq
        %v1391 = vshrl.u32 %v1390, 7
        %v1392 = vsub.s32 0, %v1391
        %v1393 = vrot.slane %v1369, %v1392
        %v1394 = vadd.f32 %v1382, %v1393
        %v1395 = vadd.f32 %v1383, %v1393
        %v1396 = vadd.f32 %v1384, %v1393
        %v1397 = vadd.f32 %v1385, %v1393
        %v1398 = vadd.f32 %v1386, %v1393
        %v1399 = vadd.f32 %v1387, %v1393
        %v1400 = vadd.f32 %v1388, %v1393
        %v1401 = vadd.f32 %v1389, %v1393
        %v1402 = vmax.f32 %v1394, 0.0
        %v1403 = vmax.f32 %v1395, 0.0
        %v1404 = vmax.f32 %v1396, 0.0
        %v1405 = vmax.f32 %v1397, 0.0
        %v1406 = vmax.f32 %v1398, 0.0
        %v1407 = vmax.f32 %v1399, 0.0
        %v1408 = vmax.f32 %v1400, 0.0
        %v1409 = vmax.f32 %v1401, 0.0
        %1410 = vst.msk [vmem:[%s136] sm:$0xff] %vm406, %v1402
        %1411 = vst.msk [vmem:[%s136 + $0x8] sm:$0xff] %vm406, %v1403
        %1412 = vst.msk [vmem:[%s136 + $0x10] sm:$0xff] %vm406, %v1404
        %1413 = vst.msk [vmem:[%s136 + $0x18] sm:$0xff] %vm406, %v1405
        %1414 = vst.msk [vmem:[%s136 + $0x20] sm:$0xff] %vm406, %v1406
        %1415 = vst.msk [vmem:[%s136 + $0x28] sm:$0xff] %vm406, %v1407
        %1416 = vst.msk [vmem:[%s136 + $0x30] sm:$0xff] %vm406, %v1408
        %1417 = vst.msk [vmem:[%s136 + $0x38] sm:$0xff] %vm406, %v1409
        %s1418 = sand.u32 %s71, 1
        %s1419 = scalar_lea.sflag [#allocation3], %s1418
        %s1420 = sand.u32 %s71, 1
        %s1421 = smul.addr %s1420, 64
        %s1422 = scalar_lea.vmem [#allocation2], %s1421
        // Predicated region
        $region29: #{tpu_custom_call.1} parent=27 // pred_check
          %p1423 = pneg %p81
        $region30: #{tpu_custom_call.1} parent=27 // pred_check_branch
          %1425 = sbr.rel (%p1423) target = $region32
        $region31: #{tpu_custom_call.1} parent=27 // pred_region
          %s1427 = ssub.s32 1024, 1024
          %1428 = vsyncadd %s1419, %s1427
          %s1429 = smul.addr %s16, 8
          %s1430 = smul.addr %s1429, 128
          %s1431 = scalar_lea.hbm %s2, %s1430
          %s1432 = sshll.u32 %s1422, 4
          %s1433 = int_to_ptr.vmem [resolvable:$true] %s1432
          %1438 = dma.vmem_to_hbm [thread:$0]  %s1433, 1024, %s1431, %s1419, 128, 128, 8
        $region32: #{tpu_custom_call.1} parent=27 // pred_fallthru
          _
      $region28: #{tpu_custom_call.1} parent=5 // pred_fallthru
        _
      %p1439 = scmp.le.s32.totalorder 2, %s11
      // Predicated region
      $region33: #{tpu_custom_call.1} parent=5 // pred_check
        %p1440 = pneg %p1439
      $region34: #{tpu_custom_call.1} parent=5 // pred_check_branch
        %1442 = sbr.rel (%p1440) target = $region36
      $region35: #{tpu_custom_call.1} parent=5 // pred_region
        %s1443 = ssub.s32 %s11, 2
        // Predicated region
        $region37: #{tpu_custom_call.1} parent=35 // pred_check
          %p1444 = pneg %p87
        $region38: #{tpu_custom_call.1} parent=35 // pred_check_branch
          %1446 = sbr.rel (%p1444) target = $region40
        $region39: #{tpu_custom_call.1} parent=35 // pred_region
          %s1447 = sand.u32 %s72, 1
          %s1448 = scalar_lea.sflag [#allocation3], %s1447
          %s1449 = sand.u32 %s72, 1
          %s1450 = smul.addr %s1449, 64
          %s1451 = scalar_lea.vmem [#allocation2], %s1450
          %1452 = dma.done %s1448, 1024
        $region40: #{tpu_custom_call.1} parent=35 // pred_fallthru
          _
      $region36: #{tpu_custom_call.1} parent=5 // pred_fallthru
        _
    $region6: #{tpu_custom_call.1} parent=1 // loop_footer
      %s15 = sadd.s32 1, %s11
    $region7: #{tpu_custom_call.1} parent=1 // loop_footer_branch
      %10 = sbr.rel target = $region3
    $region8: #{tpu_custom_call.1} parent=1 // loop_exit
      _
    %1453 = vsyncpa [#allocation3], 1
    %s1454 = scalar_lea.sflag [#allocation3], 1
    %1455 = vsyncpa %s1454, 1

</llo_original>
